<compile_context>
chip_gen: v7x
topology: tpu7x:2x2x1
jax: 0.10.0
libtpu: 0.0.40
codegen_flags: <defaults>
</compile_context>

<pallas_src>
import numpy as np
import jax
import jax.numpy as jnp
from jax.experimental import pallas as pl
from jax.experimental.pallas import tpu as pltpu


# ----------------------------------------------------------------------------
# Complex matmul on the MXU, f32 accumulation.
# ----------------------------------------------------------------------------
def _make_cmm(use_gauss):
    """(ar + i*ai) @ (br + i*bi) with f32 accumulation.

    Gauss/Karatsuba 3-multiply only for f32 operands (25% less MXU work,
    cancellation far below test tolerance).  For bf16 operands the plain
    4-multiply form avoids stacking the (t3 - t1 - t2) cancellation on top of
    bf16 operand rounding.
    """
    if use_gauss:
        def cmm(ar, ai, br, bi):
            t1 = jnp.dot(ar, br, preferred_element_type=jnp.float32)
            t2 = jnp.dot(ai, bi, preferred_element_type=jnp.float32)
            t3 = jnp.dot(ar + ai, br + bi, preferred_element_type=jnp.float32)
            return t1 - t2, t3 - t1 - t2
    else:
        def cmm(ar, ai, br, bi):
            rr = (jnp.dot(ar, br, preferred_element_type=jnp.float32)
                  - jnp.dot(ai, bi, preferred_element_type=jnp.float32))
            ii = (jnp.dot(ar, bi, preferred_element_type=jnp.float32)
                  + jnp.dot(ai, br, preferred_element_type=jnp.float32))
            return rr, ii
    return cmm


# ----------------------------------------------------------------------------
# Kernels.  The batch dim is squeezed out by the BlockSpec, so x / out blocks
# are (2, H, W) / (2, tile_h, W).  `shared_f` variants reuse one DFT matrix
# stream for both sides (square images, no row tiling).
# ----------------------------------------------------------------------------
def _make_fwd_kernel(use_gauss, shared_f):
    cmm = _make_cmm(use_gauss)

    def body(m, lr, li, rr, ri, x_ref, o_ref):
        # out[rows] = M[rows] (*) (F_H[rows, :] @ X @ F_W)
        cdt = lr.dtype
        xr = x_ref[0].astype(cdt)
        xi = x_ref[1].astype(cdt)
        tr, ti = cmm(lr, li, xr, xi)
        kr, ki = cmm(tr.astype(cdt), ti.astype(cdt), rr, ri)
        o_ref[0] = (kr * m).astype(o_ref.dtype)
        o_ref[1] = (ki * m).astype(o_ref.dtype)

    if shared_f:
        def kernel(mask_ref, fr_ref, fi_ref, x_ref, o_ref):
            fr, fi = fr_ref[...], fi_ref[...]
            body(mask_ref[...], fr, fi, fr, fi, x_ref, o_ref)
    else:
        def kernel(mask_ref, lr_ref, li_ref, rr_ref, ri_ref, x_ref, o_ref):
            body(mask_ref[...], lr_ref[...], li_ref[...],
                 rr_ref[...], ri_ref[...], x_ref, o_ref)
    return kernel


def _make_adj_kernel(use_gauss, shared_f):
    cmm = _make_cmm(use_gauss)

    def body(m, lr, li, rr, ri, x_ref, o_ref):
        # out[rows] = conj(F_H)[rows, :] @ (M (*) X) @ conj(F_W)
        # (imag parts already negated by the caller; F symmetric => no transpose)
        cdt = lr.dtype
        xr = (x_ref[0] * m).astype(cdt)
        xi = (x_ref[1] * m).astype(cdt)
        tr, ti = cmm(lr, li, xr, xi)
        kr, ki = cmm(tr.astype(cdt), ti.astype(cdt), rr, ri)
        o_ref[0] = kr.astype(o_ref.dtype)
        o_ref[1] = ki.astype(o_ref.dtype)

    if shared_f:
        def kernel(mask_ref, fr_ref, fi_ref, x_ref, o_ref):
            fr, nfi = fr_ref[...], -fi_ref[...]
            body(mask_ref[...], fr, nfi, fr, nfi, x_ref, o_ref)
    else:
        def kernel(mask_ref, lr_ref, li_ref, rr_ref, ri_ref, x_ref, o_ref):
            body(mask_ref[...], lr_ref[...], -li_ref[...],
                 rr_ref[...], -ri_ref[...], x_ref, o_ref)
    return kernel


def _make_normal_kernel(use_gauss, square):
    cmm = _make_cmm(use_gauss)

    def body(msq, fhr, fhi, fwr, fwi, x_ref, o_ref):
        # Fused A^H A: k-space never leaves VMEM; single mask multiply with
        # M*M (precomputed host-side; exact for real masks, == M for 0/1).
        cdt = fhr.dtype
        xr = x_ref[0].astype(cdt)
        xi = x_ref[1].astype(cdt)
        tr, ti = cmm(fhr, fhi, xr, xi)                          # F_H @ X
        kr, ki = cmm(tr.astype(cdt), ti.astype(cdt), fwr, fwi)  # ... @ F_W
        kr = (kr * msq).astype(cdt)                             # M^2 (*) K
        ki = (ki * msq).astype(cdt)
        ur, ui = cmm(fhr, -fhi, kr, ki)                         # conj(F_H) @ ...
        vr, vi = cmm(ur.astype(cdt), ui.astype(cdt), fwr, -fwi)  # ... @ conj(F_W)
        o_ref[0] = vr.astype(o_ref.dtype)
        o_ref[1] = vi.astype(o_ref.dtype)

    if square:
        def kernel(msq_ref, fr_ref, fi_ref, x_ref, o_ref):
            fr, fi = fr_ref[...], fi_ref[...]
            body(msq_ref[...], fr, fi, fr, fi, x_ref, o_ref)
    else:
        def kernel(msq_ref, fhr_ref, fhi_ref, fwr_ref, fwi_ref, x_ref, o_ref):
            body(msq_ref[...], fhr_ref[...], fhi_ref[...],
                 fwr_ref[...], fwi_ref[...], x_ref, o_ref)
    return kernel


# ----------------------------------------------------------------------------
# Launch helpers.
# ----------------------------------------------------------------------------
def _block_spec(shape, index_map, single_buffered=False):
    """BlockSpec; grid-invariant constants may be single-buffered (halves their
    VMEM footprint).  Falls back to default double-buffering on JAX versions
    without BlockSpec.pipeline_mode / pl.Buffered."""
    if single_buffered:
        try:
            return pl.BlockSpec(shape, index_map, pipeline_mode=pl.Buffered(1))
        except (TypeError, AttributeError):
            pass
    return pl.BlockSpec(shape, index_map)


def _row_tile(H, B):
    """Output-row tile for forward/adjoint.

    Full rows unless (a) B == 1, where splitting H keeps both v7x TensorCores
    busy, or (b) H is very large, where bounding the resident F_H slab keeps
    VMEM in budget.  Tiles stay sublane-aligned (multiple of 8); 256-row tiles
    (MXU-aligned on v6e/v7x) for large H.
    """
    if H % 8 != 0:
        return H                      # cannot tile below the (8, 128) rule
    if H >= 1024 and H % 256 == 0:
        return 256
    if B == 1 and H % 16 == 0:
        return H // 2
    return H


def _vmem_limit_bytes(est_bytes):
    # Keep at least the 32 MiB default scoped limit; cap at 128 MiB (v5e/v6e).
    # NOTE: v7x has only 64 MiB physical VMEM; at very large H/W the fused
    # normal() needs further tiling there (see TODO at top of file).
    return int(min(max(32 << 20, 2 * est_bytes), 128 << 20))


def _dft_matrix(n):
    k = np.arange(n)
    ang = -2.0 * np.pi * np.outer(k, k) / n
    s = 1.0 / np.sqrt(n)
    return (np.cos(ang) * s).astype(np.float32), (np.sin(ang) * s).astype(np.float32)


# ----------------------------------------------------------------------------
# The linear operator A (masked orthonormal 2D DFT) with Pallas kernels.
# ----------------------------------------------------------------------------
class MaskedFourierOp:
    """A(x) = M (*) FFT2_ortho(x);  A(x, adjoint=True) = IFFT2_ortho(M (*) x).

    x is [B, 2, H, W] (real, imag channel pair).  Only F_H (and F_W if H != W)
    is stored: the orthonormal DFT matrix is exactly symmetric and the adjoint
    factors are its conjugate (folded into the kernels).  compute_dtype sets
    the dtype of the DFT factors / MXU operands (f32 accumulation always);
    bfloat16 default gives ~2-3x MXU throughput and half the constant DMA/VMEM
    on v5e/v6e/v7x.  Use compute_dtype=jnp.float32 for strict accuracy.

    NOTE: normal() uses a precomputed M*M, which is exact only for
    real-valued masks (always true for sampling masks).
    """

    def __init__(self, mask, compute_dtype=jnp.bfloat16):
        mask = np.asarray(mask, np.float32)
        H, W = mask.shape
        self.H, self.W = H, W
        self.square = (H == W)
        self.compute_dtype = compute_dtype
        self.cdt = np.dtype(compute_dtype)
        self.use_gauss = (self.cdt == np.dtype(np.float32))

        fh_r, fh_i = _dft_matrix(H)
        self.fh_r = jnp.asarray(fh_r, compute_dtype)
        self.fh_i = jnp.asarray(fh_i, compute_dtype)
        if self.square:
            self.fw_r, self.fw_i = self.fh_r, self.fh_i
        else:
            fw_r, fw_i = _dft_matrix(W)
            self.fw_r = jnp.asarray(fw_r, compute_dtype)
            self.fw_i = jnp.asarray(fw_i, compute_dtype)

        # Mask kept in f32 (exact for soft masks); mask_sq = M*M lets normal()
        # apply the mask once (exact for real-valued masks, == M for binary).
        self.mask = jnp.asarray(mask, jnp.float32)
        self.mask_sq = jnp.asarray(mask * mask, jnp.float32)
        self._calls = {}

    # ------------------------------------------------------------------ #
    def _build_fwd_adj(self, B, adjoint, single_buffered):
        H, W = self.H, self.W
        tile_h = _row_tile(H, B)
        R = H // tile_h
        shared_f = self.square and R == 1       # one DFT stream drives both sides
        sb = single_buffered
        itemsize = self.cdt.itemsize
        nmm = 3 if self.use_gauss else 4

        # mask multiplies the output k-space rows (forward) or the full input
        # image (adjoint).
        if adjoint:
            mask_spec = _block_spec((H, W), lambda b, r: (0, 0), sb)
        else:
            mask_spec = _block_spec((tile_h, W), lambda b, r: (r, 0), sb and R == 1)

        if shared_f:
            f_specs = [_block_spec((H, H), lambda b, r: (0, 0), sb) for _ in range(2)]
            in_specs = [mask_spec] + f_specs
            consts = (self.mask, self.fh_r, self.fh_i)
            const_bytes = H * W * 4 + 2 * H * H * itemsize
        else:
            l_specs = [_block_spec((tile_h, H), lambda b, r: (r, 0), sb and R == 1)
                       for _ in range(2)]
            r_specs = [_block_spec((W, W), lambda b, r: (0, 0), sb) for _ in range(2)]
            in_specs = [mask_spec] + l_specs + r_specs
            consts = (self.mask, self.fh_r, self.fh_i, self.fw_r, self.fw_i)
            const_bytes = H * W * 4 + 2 * H * H * itemsize + 2 * W * W * itemsize

        x_spec = pl.BlockSpec((None, 2, H, W), lambda b, r: (b, 0, 0, 0))
        out_spec = pl.BlockSpec((None, 2, tile_h, W), lambda b, r: (b, 0, r, 0))

        kernel = (_make_adj_kernel if adjoint else _make_fwd_kernel)(
            self.use_gauss, shared_f)

        flops = int(2 * nmm * B * (H * H * W + H * W * W))
        io_bytes = 2 * B * 2 * H * W * 4
        est_vmem = (2 * const_bytes + 4 * 2 * H * W * 4
                    + 4 * 2 * tile_h * W * 4 + 12 * tile_h * max(H, W) * 4)

        call = pl.pallas_call(
            kernel,
            out_shape=jax.ShapeDtypeStruct((B, 2, H, W), jnp.float32),
            grid=(B, R),
            in_specs=in_specs + [x_spec],
            out_specs=out_spec,
            compiler_params=pltpu.CompilerParams(
                dimension_semantics=("parallel", "parallel"),
                vmem_limit_bytes=_vmem_limit_bytes(est_vmem)),
            cost_estimate=pl.CostEstimate(flops=flops, transcendentals=0,
                                          bytes_accessed=int(const_bytes + io_bytes)),
        )
        return call, consts

    def _build_normal(self, B, single_buffered):
        H, W = self.H, self.W
        sb = single_buffered
        itemsize = self.cdt.itemsize
        nmm = 3 if self.use_gauss else 4

        in_specs = [_block_spec((H, W), lambda b: (0, 0), sb),
                    _block_spec((H, H), lambda b: (0, 0), sb),
                    _block_spec((H, H), lambda b: (0, 0), sb)]
        consts = [self.mask_sq, self.fh_r, self.fh_i]
        const_bytes = H * W * 4 + 2 * H * H * itemsize
        if not self.square:
            in_specs += [_block_spec((W, W), lambda b: (0, 0), sb),
                         _block_spec((W, W), lambda b: (0, 0), sb)]
            consts += [self.fw_r, self.fw_i]
            const_bytes += 2 * W * W * itemsize

        x_spec = pl.BlockSpec((None, 2, H, W), lambda b: (b, 0, 0, 0))
        out_spec = pl.BlockSpec((None, 2, H, W), lambda b: (b, 0, 0, 0))

        kernel = _make_normal_kernel(self.use_gauss, self.square)

        flops = int(4 * nmm * B * (H * H * W + H * W * W))
        io_bytes = 2 * B * 2 * H * W * 4
        est_vmem = 2 * const_bytes + 8 * 2 * H * W * 4 + 12 * H * max(H, W) * 4

        call = pl.pallas_call(
            kernel,
            out_shape=jax.ShapeDtypeStruct((B, 2, H, W), jnp.float32),
            grid=(B,),
            in_specs=in_specs + [x_spec],
            out_specs=out_spec,
            compiler_params=pltpu.CompilerParams(
                dimension_semantics=("parallel",),
                vmem_limit_bytes=_vmem_limit_bytes(est_vmem)),
            cost_estimate=pl.CostEstimate(flops=flops, transcendentals=0,
                                          bytes_accessed=int(const_bytes + io_bytes)),
        )
        return call, tuple(consts)

    # ------------------------------------------------------------------ #
    def _run(self, key, builder, x):
        entry = self._calls.get(key)
        if entry is None:
            entry = builder(True)          # try single-buffered constants first
            self._calls[key] = entry
        call, consts = entry
        try:
            return call(*consts, x)
        except Exception:
            # pl.Buffered(1) (single-buffered constants) not supported by this
            # JAX/Mosaic version -> rebuild with default double buffering.
            entry = builder(False)
            self._calls[key] = entry
            call, consts = entry
            return call(*consts, x)

    def __call__(self, x, adjoint=False):
        assert x.ndim == 4 and x.shape[1] == 2, "expected [B, 2, H, W] input"
        B = x.shape[0]
        key = ("adj" if adjoint else "fwd", B)
        return self._run(key, lambda sb: self._build_fwd_adj(B, adjoint, sb), x)

    def normal(self, x):
        assert x.ndim == 4 and x.shape[1] == 2, "expected [B, 2, H, W] input"
        B = x.shape[0]
        return self._run(("normal", B), lambda sb: self._build_normal(B, sb), x)


# ----------------------------------------------------------------------------
# JAX/Pallas port of modl_singlechannel_reference.MoDL_single.Operator
# ----------------------------------------------------------------------------
class Operator:
    def __init__(self, A):
        self.operator = A

    def forward(self, x):
        return self.operator(x)

    __call__ = forward

    def adjoint(self, x):
        return self.operator(x, adjoint=True)

    def normal(self, x):
        # Prefer the operator's fused A^H A kernel (k-space stays in VMEM);
        # fall back to plain composition for operators without one.
        if hasattr(self.operator, "normal"):
            return self.operator.normal(x)
        return self.adjoint(self.forward(x))


# ----------------------------------------------------------------------------
# Demo / correctness check
# ----------------------------------------------------------------------------
if __name__ == "__main__":
    B, H, W = 2, 16, 16

    # Deterministic undersampling mask (every other column + center band).
    mask_np = np.zeros((H, W), np.float32)
    mask_np[:, ::2] = 1.0
    mask_np[:, W // 2 - 2: W // 2 + 2] = 1.0

    key = jax.random.PRNGKey(0)
    x = jax.random.normal(key, (B, 2, H, W), dtype=jnp.float32)

    # Reference via host-side complex FFT (orthonormal), same semantics.
    x_np = np.asarray(x)
    xc = x_np[:, 0] + 1j * x_np[:, 1]
    yc_ref = mask_np[None] * np.fft.fft2(xc, norm="ortho")
    xadj_ref = np.fft.ifft2(mask_np[None] * yc_ref, norm="ortho")

    def check(op, tol):
        y = jax.block_until_ready(op.forward(x))
        x_adj = jax.block_until_ready(op.adjoint(y))       # composed A^H(A x)
        x_nrm = jax.block_until_ready(op.normal(x))        # fused A^H A kernel
        np.testing.assert_allclose(np.asarray(y[:, 0]), yc_ref.real, rtol=tol, atol=tol)
        np.testing.assert_allclose(np.asarray(y[:, 1]), yc_ref.imag, rtol=tol, atol=tol)
        np.testing.assert_allclose(np.asarray(x_nrm[:, 0]), xadj_ref.real, rtol=tol, atol=tol)
        np.testing.assert_allclose(np.asarray(x_nrm[:, 1]), xadj_ref.imag, rtol=tol, atol=tol)
        # fused normal() must match the composed adjoint(forward(x)) path
        np.testing.assert_allclose(np.asarray(x_adj), np.asarray(x_nrm), rtol=tol, atol=tol)

    # Strict check: f32 DFT factors (Gauss 3-multiply complex matmul).
    check(Operator(MaskedFourierOp(mask_np, compute_dtype=jnp.float32)), 1e-4)
    # Default path: bf16 DFT factors / operands, f32 accumulation, 4-multiply
    # complex matmul.  Loose sanity tolerance for bf16 operand rounding.
    check(Operator(MaskedFourierOp(mask_np)), 1e-1)

    print("KERNEL_OK")
</pallas_src>

<mosaic_0001>
module attributes {stable_mosaic.version = 11 : i64} {
  func.func @kernel(%arg0: i32, %arg1: i32, %arg2: memref<16x16xf32, #tpu.memory_space<vmem>>, %arg3: memref<16x16xf32, #tpu.memory_space<vmem>>, %arg4: memref<16x16xf32, #tpu.memory_space<vmem>>, %arg5: memref<1x2x16x16xf32, #tpu.memory_space<vmem>>, %arg6: memref<1x2x16x16xf32, #tpu.memory_space<vmem>>) attributes {dimension_semantics = [#tpu.dimension_semantics<parallel>, #tpu.dimension_semantics<parallel>], iteration_bounds = array<i64: 2, 1>, scalar_prefetch = 0 : i64, scratch_operands = 0 : i64, tpu.core_type = #tpu.core_type<tc>, window_params = [{pipeline_mode = #tpu.pipeline_mode<synchronous>, transform_indices = @transform_0, window_bounds = array<i64: 16, 16>}, {pipeline_mode = #tpu.pipeline_mode<synchronous>, transform_indices = @transform_1, window_bounds = array<i64: 16, 16>}, {pipeline_mode = #tpu.pipeline_mode<synchronous>, transform_indices = @transform_2, window_bounds = array<i64: 16, 16>}, {transform_indices = @transform_3, window_bounds = array<i64: 1, 2, 16, 16>}, {transform_indices = @transform_4, window_bounds = array<i64: 1, 2, 16, 16>}]} {
    %c0 = arith.constant 0 : index
    %c0_0 = arith.constant 0 : index
    %0 = vector.load %arg3[%c0, %c0_0] : memref<16x16xf32, #tpu.memory_space<vmem>>, vector<16x16xf32>
    %c0_1 = arith.constant 0 : index
    %c0_2 = arith.constant 0 : index
    %1 = vector.load %arg4[%c0_1, %c0_2] : memref<16x16xf32, #tpu.memory_space<vmem>>, vector<16x16xf32>
    %c0_3 = arith.constant 0 : index
    %c0_4 = arith.constant 0 : index
    %2 = vector.load %arg2[%c0_3, %c0_4] : memref<16x16xf32, #tpu.memory_space<vmem>>, vector<16x16xf32>
    %c0_5 = arith.constant 0 : index
    %c0_6 = arith.constant 0 : index
    %c0_7 = arith.constant 0 : index
    %c0_8 = arith.constant 0 : index
    %3 = vector.load %arg5[%c0_5, %c0_6, %c0_7, %c0_8] : memref<1x2x16x16xf32, #tpu.memory_space<vmem>>, vector<1x1x16x16xf32>
    %4 = vector.shape_cast %3 : vector<1x1x16x16xf32> to vector<16x16xf32>
    %c0_9 = arith.constant 0 : index
    %c1 = arith.constant 1 : index
    %c0_10 = arith.constant 0 : index
    %c0_11 = arith.constant 0 : index
    %5 = vector.load %arg5[%c0_9, %c1, %c0_10, %c0_11] : memref<1x2x16x16xf32, #tpu.memory_space<vmem>>, vector<1x1x16x16xf32>
    %6 = vector.shape_cast %5 : vector<1x1x16x16xf32> to vector<16x16xf32>
    %cst = arith.constant dense<0.000000e+00> : vector<16x16xf32>
    %7 = tpu.matmul %0, %4, %cst {dimension_numbers = #tpu.dot_dimension_numbers<[1], [0], [0], [1], [0, 0, 1, 1], [], []>} : vector<16x16xf32>, vector<16x16xf32>, vector<16x16xf32> -> vector<16x16xf32>
    %cst_12 = arith.constant dense<0.000000e+00> : vector<16x16xf32>
    %8 = tpu.matmul %1, %6, %cst_12 {dimension_numbers = #tpu.dot_dimension_numbers<[1], [0], [0], [1], [0, 0, 1, 1], [], []>} : vector<16x16xf32>, vector<16x16xf32>, vector<16x16xf32> -> vector<16x16xf32>
    %9 = arith.addf %0, %1 : vector<16x16xf32>
    %10 = arith.addf %4, %6 : vector<16x16xf32>
    %cst_13 = arith.constant dense<0.000000e+00> : vector<16x16xf32>
    %11 = tpu.matmul %9, %10, %cst_13 {dimension_numbers = #tpu.dot_dimension_numbers<[1], [0], [0], [1], [0, 0, 1, 1], [], []>} : vector<16x16xf32>, vector<16x16xf32>, vector<16x16xf32> -> vector<16x16xf32>
    %12 = arith.subf %7, %8 : vector<16x16xf32>
    %13 = arith.subf %11, %7 : vector<16x16xf32>
    %14 = arith.subf %13, %8 : vector<16x16xf32>
    %cst_14 = arith.constant dense<0.000000e+00> : vector<16x16xf32>
    %15 = tpu.matmul %12, %0, %cst_14 {dimension_numbers = #tpu.dot_dimension_numbers<[1], [0], [0], [1], [0, 0, 1, 1], [], []>} : vector<16x16xf32>, vector<16x16xf32>, vector<16x16xf32> -> vector<16x16xf32>
    %cst_15 = arith.constant dense<0.000000e+00> : vector<16x16xf32>
    %16 = tpu.matmul %14, %1, %cst_15 {dimension_numbers = #tpu.dot_dimension_numbers<[1], [0], [0], [1], [0, 0, 1, 1], [], []>} : vector<16x16xf32>, vector<16x16xf32>, vector<16x16xf32> -> vector<16x16xf32>
    %17 = arith.addf %12, %14 : vector<16x16xf32>
    %18 = arith.addf %0, %1 : vector<16x16xf32>
    %cst_16 = arith.constant dense<0.000000e+00> : vector<16x16xf32>
    %19 = tpu.matmul %17, %18, %cst_16 {dimension_numbers = #tpu.dot_dimension_numbers<[1], [0], [0], [1], [0, 0, 1, 1], [], []>} : vector<16x16xf32>, vector<16x16xf32>, vector<16x16xf32> -> vector<16x16xf32>
    %20 = arith.subf %15, %16 : vector<16x16xf32>
    %21 = arith.subf %19, %15 : vector<16x16xf32>
    %22 = arith.subf %21, %16 : vector<16x16xf32>
    %23 = arith.mulf %20, %2 : vector<16x16xf32>
    %c0_17 = arith.constant 0 : index
    %c0_18 = arith.constant 0 : index
    %c0_19 = arith.constant 0 : index
    %c0_20 = arith.constant 0 : index
    %24 = vector.load %arg6[%c0_17, %c0_18, %c0_19, %c0_20] : memref<1x2x16x16xf32, #tpu.memory_space<vmem>>, vector<1x1x16x16xf32>
    %25 = vector.shape_cast %24 : vector<1x1x16x16xf32> to vector<16x16xf32>
    %26 = vector.shape_cast %23 : vector<16x16xf32> to vector<1x1x16x16xf32>
    tpu.vector_store %arg6[%c0_17, %c0_18, %c0_19, %c0_20], %26 {strides = array<i32>} : memref<1x2x16x16xf32, #tpu.memory_space<vmem>>, vector<1x1x16x16xf32>,
    %27 = arith.mulf %22, %2 : vector<16x16xf32>
    %c0_21 = arith.constant 0 : index
    %c1_22 = arith.constant 1 : index
    %c0_23 = arith.constant 0 : index
    %c0_24 = arith.constant 0 : index
    %28 = vector.load %arg6[%c0_21, %c1_22, %c0_23, %c0_24] : memref<1x2x16x16xf32, #tpu.memory_space<vmem>>, vector<1x1x16x16xf32>
    %29 = vector.shape_cast %28 : vector<1x1x16x16xf32> to vector<16x16xf32>
    %30 = vector.shape_cast %27 : vector<16x16xf32> to vector<1x1x16x16xf32>
    tpu.vector_store %arg6[%c0_21, %c1_22, %c0_23, %c0_24], %30 {strides = array<i32>} : memref<1x2x16x16xf32, #tpu.memory_space<vmem>>, vector<1x1x16x16xf32>,
    return
  }
  func.func @transform_0(%arg0: i32, %arg1: i32) -> (i32, i32) {
    %c0_i32 = arith.constant 0 : i32
    %c0_i32_0 = arith.constant 0 : i32
    return %arg1, %c0_i32 : i32, i32
  }
  func.func @transform_1(%arg0: i32, %arg1: i32) -> (i32, i32) {
    %c0_i32 = arith.constant 0 : i32
    %c0_i32_0 = arith.constant 0 : i32
    %c0_i32_1 = arith.constant 0 : i32
    return %c0_i32, %c0_i32_0 : i32, i32
  }
  func.func @transform_2(%arg0: i32, %arg1: i32) -> (i32, i32) {
    %c0_i32 = arith.constant 0 : i32
    %c0_i32_0 = arith.constant 0 : i32
    %c0_i32_1 = arith.constant 0 : i32
    return %c0_i32, %c0_i32_0 : i32, i32
  }
  func.func @transform_3(%arg0: i32, %arg1: i32) -> (i32, i32, i32, i32) {
    %c0_i32 = arith.constant 0 : i32
    %c0_i32_0 = arith.constant 0 : i32
    %c0_i32_1 = arith.constant 0 : i32
    %c0_i32_2 = arith.constant 0 : i32
    return %arg0, %c0_i32, %c0_i32_0, %c0_i32_1 : i32, i32, i32, i32
  }
  func.func @transform_4(%arg0: i32, %arg1: i32) -> (i32, i32, i32, i32) {
    %c0_i32 = arith.constant 0 : i32
    %c0_i32_0 = arith.constant 0 : i32
    %c0_i32_1 = arith.constant 0 : i32
    return %arg0, %c0_i32, %arg1, %c0_i32_0 : i32, i32, i32, i32
  }
}

module attributes {stable_mosaic.version = 11 : i64} {
  func.func @kernel(%arg0: i32, %arg1: i32, %arg2: memref<16x16xf32, #tpu.memory_space<vmem>>, %arg3: memref<16x16xf32, #tpu.memory_space<vmem>>, %arg4: memref<16x16xf32, #tpu.memory_space<vmem>>, %arg5: memref<1x2x16x16xf32, #tpu.memory_space<vmem>>, %arg6: memref<1x2x16x16xf32, #tpu.memory_space<vmem>>) attributes {dimension_semantics = [#tpu.dimension_semantics<parallel>, #tpu.dimension_semantics<parallel>], iteration_bounds = array<i64: 2, 1>, scalar_prefetch = 0 : i64, scratch_operands = 0 : i64, tpu.core_type = #tpu.core_type<tc>, window_params = [{transform_indices = @transform_0, window_bounds = array<i64: 16, 16>}, {pipeline_mode = #tpu.pipeline_mode<synchronous>, transform_indices = @transform_1, window_bounds = array<i64: 16, 16>}, {pipeline_mode = #tpu.pipeline_mode<synchronous>, transform_indices = @transform_2, window_bounds = array<i64: 16, 16>}, {transform_indices = @transform_3, window_bounds = array<i64: 1, 2, 16, 16>}, {transform_indices = @transform_4, window_bounds = array<i64: 1, 2, 16, 16>}]} {
    %c0 = arith.constant 0 : index
    %c0_0 = arith.constant 0 : index
    %0 = vector.load %arg3[%c0, %c0_0] : memref<16x16xf32, #tpu.memory_space<vmem>>, vector<16x16xf32>
    %c0_1 = arith.constant 0 : index
    %c0_2 = arith.constant 0 : index
    %1 = vector.load %arg4[%c0_1, %c0_2] : memref<16x16xf32, #tpu.memory_space<vmem>>, vector<16x16xf32>
    %c0_3 = arith.constant 0 : index
    %c0_4 = arith.constant 0 : index
    %2 = vector.load %arg2[%c0_3, %c0_4] : memref<16x16xf32, #tpu.memory_space<vmem>>, vector<16x16xf32>
    %c0_5 = arith.constant 0 : index
    %c0_6 = arith.constant 0 : index
    %c0_7 = arith.constant 0 : index
    %c0_8 = arith.constant 0 : index
    %3 = vector.load %arg5[%c0_5, %c0_6, %c0_7, %c0_8] : memref<1x2x16x16xf32, #tpu.memory_space<vmem>>, vector<1x1x16x16xf32>
    %4 = vector.shape_cast %3 : vector<1x1x16x16xf32> to vector<16x16xf32>
    %c0_9 = arith.constant 0 : index
    %c1 = arith.constant 1 : index
    %c0_10 = arith.constant 0 : index
    %c0_11 = arith.constant 0 : index
    %5 = vector.load %arg5[%c0_9, %c1, %c0_10, %c0_11] : memref<1x2x16x16xf32, #tpu.memory_space<vmem>>, vector<1x1x16x16xf32>
    %6 = vector.shape_cast %5 : vector<1x1x16x16xf32> to vector<16x16xf32>
    %cst = arith.constant dense<0.000000e+00> : vector<16x16xf32>
    %7 = tpu.matmul %0, %4, %cst {dimension_numbers = #tpu.dot_dimension_numbers<[1], [0], [0], [1], [0, 0, 1, 1], [], []>} : vector<16x16xf32>, vector<16x16xf32>, vector<16x16xf32> -> vector<16x16xf32>
    %cst_12 = arith.constant dense<0.000000e+00> : vector<16x16xf32>
    %8 = tpu.matmul %1, %6, %cst_12 {dimension_numbers = #tpu.dot_dimension_numbers<[1], [0], [0], [1], [0, 0, 1, 1], [], []>} : vector<16x16xf32>, vector<16x16xf32>, vector<16x16xf32> -> vector<16x16xf32>
    %9 = arith.addf %0, %1 : vector<16x16xf32>
    %10 = arith.addf %4, %6 : vector<16x16xf32>
    %cst_13 = arith.constant dense<0.000000e+00> : vector<16x16xf32>
    %11 = tpu.matmul %9, %10, %cst_13 {dimension_numbers = #tpu.dot_dimension_numbers<[1], [0], [0], [1], [0, 0, 1, 1], [], []>} : vector<16x16xf32>, vector<16x16xf32>, vector<16x16xf32> -> vector<16x16xf32>
    %12 = arith.subf %7, %8 : vector<16x16xf32>
    %13 = arith.subf %11, %7 : vector<16x16xf32>
    %14 = arith.subf %13, %8 : vector<16x16xf32>
    %cst_14 = arith.constant dense<0.000000e+00> : vector<16x16xf32>
    %15 = tpu.matmul %12, %0, %cst_14 {dimension_numbers = #tpu.dot_dimension_numbers<[1], [0], [0], [1], [0, 0, 1, 1], [], []>} : vector<16x16xf32>, vector<16x16xf32>, vector<16x16xf32> -> vector<16x16xf32>
    %cst_15 = arith.constant dense<0.000000e+00> : vector<16x16xf32>
    %16 = tpu.matmul %14, %1, %cst_15 {dimension_numbers = #tpu.dot_dimension_numbers<[1], [0], [0], [1], [0, 0, 1, 1], [], []>} : vector<16x16xf32>, vector<16x16xf32>, vector<16x16xf32> -> vector<16x16xf32>
    %17 = arith.addf %12, %14 : vector<16x16xf32>
    %18 = arith.addf %0, %1 : vector<16x16xf32>
    %cst_16 = arith.constant dense<0.000000e+00> : vector<16x16xf32>
    %19 = tpu.matmul %17, %18, %cst_16 {dimension_numbers = #tpu.dot_dimension_numbers<[1], [0], [0], [1], [0, 0, 1, 1], [], []>} : vector<16x16xf32>, vector<16x16xf32>, vector<16x16xf32> -> vector<16x16xf32>
    %20 = arith.subf %15, %16 : vector<16x16xf32>
    %21 = arith.subf %19, %15 : vector<16x16xf32>
    %22 = arith.subf %21, %16 : vector<16x16xf32>
    %23 = arith.mulf %20, %2 : vector<16x16xf32>
    %c0_17 = arith.constant 0 : index
    %c0_18 = arith.constant 0 : index
    %c0_19 = arith.constant 0 : index
    %c0_20 = arith.constant 0 : index
    %24 = vector.load %arg6[%c0_17, %c0_18, %c0_19, %c0_20] : memref<1x2x16x16xf32, #tpu.memory_space<vmem>>, vector<1x1x16x16xf32>
    %25 = vector.shape_cast %24 : vector<1x1x16x16xf32> to vector<16x16xf32>
    %26 = vector.shape_cast %23 : vector<16x16xf32> to vector<1x1x16x16xf32>
    tpu.vector_store %arg6[%c0_17, %c0_18, %c0_19, %c0_20], %26 {strides = array<i32>} : memref<1x2x16x16xf32, #tpu.memory_space<vmem>>, vector<1x1x16x16xf32>,
    %27 = arith.mulf %22, %2 : vector<16x16xf32>
    %c0_21 = arith.constant 0 : index
    %c1_22 = arith.constant 1 : index
    %c0_23 = arith.constant 0 : index
    %c0_24 = arith.constant 0 : index
    %28 = vector.load %arg6[%c0_21, %c1_22, %c0_23, %c0_24] : memref<1x2x16x16xf32, #tpu.memory_space<vmem>>, vector<1x1x16x16xf32>
    %29 = vector.shape_cast %28 : vector<1x1x16x16xf32> to vector<16x16xf32>
    %30 = vector.shape_cast %27 : vector<16x16xf32> to vector<1x1x16x16xf32>
    tpu.vector_store %arg6[%c0_21, %c1_22, %c0_23, %c0_24], %30 {strides = array<i32>} : memref<1x2x16x16xf32, #tpu.memory_space<vmem>>, vector<1x1x16x16xf32>,
    return
  }
  func.func @transform_0(%arg0: i32, %arg1: i32) -> (i32, i32) {
    %c0_i32 = arith.constant 0 : i32
    %c0_i32_0 = arith.constant 0 : i32
    return %arg1, %c0_i32 : i32, i32
  }
  func.func @transform_1(%arg0: i32, %arg1: i32) -> (i32, i32) {
    %c0_i32 = arith.constant 0 : i32
    %c0_i32_0 = arith.constant 0 : i32
    %c0_i32_1 = arith.constant 0 : i32
    return %c0_i32, %c0_i32_0 : i32, i32
  }
  func.func @transform_2(%arg0: i32, %arg1: i32) -> (i32, i32) {
    %c0_i32 = arith.constant 0 : i32
    %c0_i32_0 = arith.constant 0 : i32
    %c0_i32_1 = arith.constant 0 : i32
    return %c0_i32, %c0_i32_0 : i32, i32
  }
  func.func @transform_3(%arg0: i32, %arg1: i32) -> (i32, i32, i32, i32) {
    %c0_i32 = arith.constant 0 : i32
    %c0_i32_0 = arith.constant 0 : i32
    %c0_i32_1 = arith.constant 0 : i32
    %c0_i32_2 = arith.constant 0 : i32
    return %arg0, %c0_i32, %c0_i32_0, %c0_i32_1 : i32, i32, i32, i32
  }
  func.func @transform_4(%arg0: i32, %arg1: i32) -> (i32, i32, i32, i32) {
    %c0_i32 = arith.constant 0 : i32
    %c0_i32_0 = arith.constant 0 : i32
    %c0_i32_1 = arith.constant 0 : i32
    return %arg0, %c0_i32, %arg1, %c0_i32_0 : i32, i32, i32, i32
  }
}

</mosaic_0001>

<llo_original>
// kernel: tpu_custom_call.1
$region0: #{tpu_custom_call.1}
  #allocation0 [shape = 'u32[]', space=smem, size = 0x4, offset = 0x4, fixed_abs, tag = 'smem constant byte address 0x4 - core index']
  #allocation1 [shape = 'u32[144,128]{1,0:T(1,128)}', space=vmem, size = 0x12000, scoped, tag = 'internal scratch']
  %s0 = inlined_call_operand.hbm [shape: f32[16,16], index: 0, kind: input, shape index: {}]
  %s1 = inlined_call_operand.hbm [shape: f32[16,16], index: 1, kind: input, shape index: {}]
  %s2 = inlined_call_operand.hbm [shape: f32[16,16], index: 2, kind: input, shape index: {}]
  %s3 = inlined_call_operand.hbm [shape: f32[2,2,16,16], index: 3, kind: input, shape index: {}]
  %s4 = inlined_call_operand.hbm [shape: f32[2,2,16,16], index: 4, kind: output, shape index: {}]
  %s5 = sld [smem:[#allocation0]]
  $region65: #{tpu_custom_call.1} parent=0
    _
  %s7 = ssub.s32 1, %s5
  %s8 = scalar_select 0, %s7, %s5
  $region1: #{tpu_custom_call.1} parent=0
    #allocation2 [shape = 'u8[8192]{0}', space=vmem, size = 0x2000, scoped, tag = 'input window, operand 0, single buffered']
    #allocation3 [shape = 's32[2]{0}', space=sflag, size = 0x8, scoped, tag = 'scoped memory for tpu_custom_call.1']
    #allocation4 [shape = 's32[2]{0}', space=sflag, size = 0x8, scoped, tag = 'scoped memory for tpu_custom_call.1']
    #allocation5 [shape = 'u8[8192]{0}', space=vmem, size = 0x2000, scoped, tag = 'input window, operand 1, single buffered']
    #allocation6 [shape = 's32[1]{0}', space=sflag, size = 0x4, scoped, tag = 'scoped memory for tpu_custom_call.1']
    #allocation7 [shape = 'u8[8192]{0}', space=vmem, size = 0x2000, scoped, tag = 'input window, operand 2, single buffered']
    #allocation8 [shape = 'u8[32768]{0}', space=vmem, size = 0x8000, scoped, tag = 'input window, operand 3']
    #allocation9 [shape = 's32[2]{0}', space=sflag, size = 0x8, scoped, tag = 'scoped memory for tpu_custom_call.1']
    #allocation10 [shape = 'u8[32768]{0}', space=vmem, size = 0x8000, scoped, tag = 'output window, operand 0']
    %9 = vsyncpa [#allocation3], 0
    %10 = vsyncpa [#allocation6], 0
    %11 = vsyncpa [#allocation9], 0
    %s12 = scalar_lea.sflag [#allocation9], 1
    %13 = vsyncpa %s12, 0
    %14 = vsyncpa [#allocation4], 0
    %s15 = scalar_lea.sflag [#allocation4], 1
    %16 = vsyncpa %s15, 0
    loop: start=0, step=1, limit=4
    $region2: #{tpu_custom_call.1} parent=1 // loop_pre_header
      _
    $region3: #{tpu_custom_call.1} parent=1 // loop_header
      %s18 = sphi 0, %s22
      %p19 = scmp.ge.s32.totalorder %s18, 4
      %s25 = sphi 0, %s37
      %s26 = sphi 0, %s33
      %s27 = sphi 0, %s25
      %s28 = sphi 0, %s26
      %s29 = sphi 0, %s27
      %s30 = sphi 0, %s28
      %s40 = sphi 0, %s42
      %s43 = sphi 0, %s40
      %s44 = sphi 0, %s43
      %s60 = sphi 0, %s44
      %s64 = sphi 0, %s64
      %s66 = sphi 0, %s64
      %s67 = sphi 0, %s66
      %s81 = sphi 0, %s67
      %s85 = sphi 0, %s85
      %s87 = sphi 0, %s85
      %s88 = sphi 0, %s87
      %s102 = sphi 0, %s88
      %s108 = sphi 0, %s110
      %s111 = sphi 0, %s108
      %s112 = sphi 0, %s111
      %s128 = sphi 0, %s112
      %s136 = sphi 0, %s138
      %s139 = sphi 0, %s136
      %s140 = sphi 0, %s139
      %s156 = sphi 0, %s140
    $region4: #{tpu_custom_call.1} parent=1 // loop_header_branch
      %21 = sbr.rel (%p19) target = $region8
    $region5: #{tpu_custom_call.1} parent=1 // loop_body
      %s23 = ssub.s32 %s18, 1
      %s24 = ssub.s32 %s18, 2
      %s31 = sadd.s32 1, %s26
      %p32 = scmp.ge.s32.totalorder %s31, 1
      %s33 = scalar_select %p32, 0, %s31
      %s34 = sadd.s32 1, %s25
      %s35 = scalar_select %p32, %s34, %s25
      %p36 = scmp.ge.s32.totalorder %s35, 2
      %s37 = scalar_select %p36, 0, %s35
      %s38 = ssub.s32 %s26, %s33
      %p39 = scmp.eq.s32.totalorder %s38, 0
      %s41 = sadd.s32 %s40, 1
      %s42 = scalar_select %p39, %s40, %s41
      %p45 = pneg %p39
      %p46 = scmp.eq.s32.totalorder %s18, 1
      %p47 = por %p45, %p46
      %p48 = scmp.ne.s32.totalorder %s40, %s43
      %p49 = scmp.eq.s32.totalorder %s18, 0
      %p50 = por %p48, %p49
      %p51 = scmp.ne.s32.totalorder %s40, %s43
      %p52 = scmp.eq.s32.totalorder %s23, 1
      %p53 = por %p51, %p52
      %p54 = scmp.ne.s32.totalorder %s43, %s44
      %p55 = scmp.eq.s32.totalorder %s23, 0
      %p56 = por %p54, %p55
      %p57 = scmp.ne.s32.totalorder %s43, %s44
      %p58 = scmp.eq.s32.totalorder %s24, 1
      %p59 = por %p57, %p58
      %p61 = scmp.ne.s32.totalorder %s44, %s60
      %p62 = scmp.eq.s32.totalorder %s24, 0
      %p63 = por %p61, %p62
      %s65 = sadd.s32 %s64, 1
      %p68 = scmp.eq.s32.totalorder %s18, 1
      %p69 = scmp.ne.s32.totalorder %s64, %s66
      %p70 = scmp.eq.s32.totalorder %s18, 0
      %p71 = por %p69, %p70
      %p72 = scmp.ne.s32.totalorder %s64, %s66
      %p73 = scmp.eq.s32.totalorder %s23, 1
      %p74 = por %p72, %p73
      %p75 = scmp.ne.s32.totalorder %s66, %s67
      %p76 = scmp.eq.s32.totalorder %s23, 0
      %p77 = por %p75, %p76
      %p78 = scmp.ne.s32.totalorder %s66, %s67
      %p79 = scmp.eq.s32.totalorder %s24, 1
      %p80 = por %p78, %p79
      %p82 = scmp.ne.s32.totalorder %s67, %s81
      %p83 = scmp.eq.s32.totalorder %s24, 0
      %p84 = por %p82, %p83
      %s86 = sadd.s32 %s85, 1
      %p89 = scmp.eq.s32.totalorder %s18, 1
      %p90 = scmp.ne.s32.totalorder %s85, %s87
      %p91 = scmp.eq.s32.totalorder %s18, 0
      %p92 = por %p90, %p91
      %p93 = scmp.ne.s32.totalorder %s85, %s87
      %p94 = scmp.eq.s32.totalorder %s23, 1
      %p95 = por %p93, %p94
      %p96 = scmp.ne.s32.totalorder %s87, %s88
      %p97 = scmp.eq.s32.totalorder %s23, 0
      %p98 = por %p96, %p97
      %p99 = scmp.ne.s32.totalorder %s87, %s88
      %p100 = scmp.eq.s32.totalorder %s24, 1
      %p101 = por %p99, %p100
      %p103 = scmp.ne.s32.totalorder %s88, %s102
      %p104 = scmp.eq.s32.totalorder %s24, 0
      %p105 = por %p103, %p104
      %s106 = ssub.s32 %s25, %s37
      %p107 = scmp.eq.s32.totalorder %s106, 0
      %s109 = sadd.s32 %s108, 1
      %s110 = scalar_select %p107, %s108, %s109
      %p113 = pneg %p107
      %p114 = scmp.eq.s32.totalorder %s18, 1
      %p115 = por %p113, %p114
      %p116 = scmp.ne.s32.totalorder %s108, %s111
      %p117 = scmp.eq.s32.totalorder %s18, 0
      %p118 = por %p116, %p117
      %p119 = scmp.ne.s32.totalorder %s108, %s111
      %p120 = scmp.eq.s32.totalorder %s23, 1
      %p121 = por %p119, %p120
      %p122 = scmp.ne.s32.totalorder %s111, %s112
      %p123 = scmp.eq.s32.totalorder %s23, 0
      %p124 = por %p122, %p123
      %p125 = scmp.ne.s32.totalorder %s111, %s112
      %p126 = scmp.eq.s32.totalorder %s24, 1
      %p127 = por %p125, %p126
      %p129 = scmp.ne.s32.totalorder %s112, %s128
      %p130 = scmp.eq.s32.totalorder %s24, 0
      %p131 = por %p129, %p130
      %s132 = ssub.s32 %s25, %s37
      %s133 = ssub.s32 %s26, %s33
      %s134 = sor.u32 %s132, %s133
      %p135 = scmp.eq.s32.totalorder %s134, 0
      %s137 = sadd.s32 %s136, 1
      %s138 = scalar_select %p135, %s136, %s137
      %p141 = pneg %p135
      %p142 = scmp.eq.s32.totalorder %s18, 1
      %p143 = por %p141, %p142
      %p144 = scmp.ne.s32.totalorder %s136, %s139
      %p145 = scmp.eq.s32.totalorder %s18, 0
      %p146 = por %p144, %p145
      %p147 = scmp.ne.s32.totalorder %s136, %s139
      %p148 = scmp.eq.s32.totalorder %s23, 1
      %p149 = por %p147, %p148
      %p150 = scmp.ne.s32.totalorder %s139, %s140
      %p151 = scmp.eq.s32.totalorder %s23, 0
      %p152 = por %p150, %p151
      %p153 = scmp.ne.s32.totalorder %s139, %s140
      %p154 = scmp.eq.s32.totalorder %s24, 1
      %p155 = por %p153, %p154
      %p157 = scmp.ne.s32.totalorder %s140, %s156
      %p158 = scmp.eq.s32.totalorder %s24, 0
      %p159 = por %p157, %p158
      %p160 = scmp.le.s32.totalorder 1, %s18
      %p161 = scmp.lt.s32.totalorder %s18, 3
      %p162 = pnand %p160, %p161
      %p163 = pneg %p162
      // Predicated region
      $region9: #{tpu_custom_call.1} parent=5 // pred_check
        _
      $region10: #{tpu_custom_call.1} parent=5 // pred_check_branch
        %165 = sbr.rel (%p162) target = $region12
      $region11: #{tpu_custom_call.1} parent=5 // pred_region
        %s166 = ssub.s32 %s18, 1
        // Predicated region
        $region13: #{tpu_custom_call.1} parent=11 // pred_check
          %p167 = pneg %p56
        $region14: #{tpu_custom_call.1} parent=11 // pred_check_branch
          %169 = sbr.rel (%p167) target = $region16
        $region15: #{tpu_custom_call.1} parent=11 // pred_region
          %s170 = smul.u32 2, %s28
          %s172 = ssub.s32 256, 256
          %173 = vsyncadd [#allocation3], %s172
          %s174 = smul.addr %s170, 128
          %s175 = scalar_lea.hbm %s0, %s174
          %s176 = sshll.u32 [#allocation2], 4
          %s177 = int_to_ptr.vmem [resolvable:$true] %s176
          %182 = dma.hbm_to_vmem [thread:$0]  %s175, 256, %s177, [#allocation3], 128, 128, 8
        $region16: #{tpu_custom_call.1} parent=11 // pred_fallthru
          _
        // Predicated region
        $region17: #{tpu_custom_call.1} parent=11 // pred_check
          %p183 = pneg %p77
        $region18: #{tpu_custom_call.1} parent=11 // pred_check_branch
          %185 = sbr.rel (%p183) target = $region20
        $region19: #{tpu_custom_call.1} parent=11 // pred_region
          %s187 = ssub.s32 256, 256
          %188 = vsyncadd [#allocation6], %s187
          %s189 = sshll.u32 [#allocation5], 4
          %s190 = int_to_ptr.vmem [resolvable:$true] %s189
          %195 = dma.hbm_to_vmem [thread:$0]  %s1, 256, %s190, [#allocation6], 128, 128, 8
        $region20: #{tpu_custom_call.1} parent=11 // pred_fallthru
          _
        // Predicated region
        $region21: #{tpu_custom_call.1} parent=11 // pred_check
          %p196 = pneg %p98
        $region22: #{tpu_custom_call.1} parent=11 // pred_check_branch
          %198 = sbr.rel (%p196) target = $region24
        $region23: #{tpu_custom_call.1} parent=11 // pred_region
          %s200 = ssub.s32 256, 256
          %201 = vsyncadd [#allocation6], %s200
          %s202 = sshll.u32 [#allocation7], 4
          %s203 = int_to_ptr.vmem [resolvable:$true] %s202
          %208 = dma.hbm_to_vmem [thread:$0]  %s2, 256, %s203, [#allocation6], 128, 128, 8
        $region24: #{tpu_custom_call.1} parent=11 // pred_fallthru
          _
      $region12: #{tpu_custom_call.1} parent=5 // pred_fallthru
        _
      %p209 = scmp.lt.s32.totalorder %s18, 2
      // Predicated region
      $region25: #{tpu_custom_call.1} parent=5 // pred_check
        %p210 = pneg %p209
      $region26: #{tpu_custom_call.1} parent=5 // pred_check_branch
        %212 = sbr.rel (%p210) target = $region28
      $region27: #{tpu_custom_call.1} parent=5 // pred_region
        // Predicated region
        $region29: #{tpu_custom_call.1} parent=27 // pred_check
          %p213 = pneg %p118
        $region30: #{tpu_custom_call.1} parent=27 // pred_check_branch
          %215 = sbr.rel (%p213) target = $region32
        $region31: #{tpu_custom_call.1} parent=27 // pred_region
          %s216 = sand.u32 %s108, 1
          %s217 = scalar_lea.sflag [#allocation9], %s216
          %s218 = sand.u32 %s108, 1
          %s219 = smul.addr %s218, 32
          %s220 = scalar_lea.vmem [#allocation8], %s219
          %s222 = ssub.s32 512, 512
          %223 = vsyncadd %s217, %s222
          %s224 = smul.addr %s25, 4
          %s225 = smul.addr %s224, 128
          %s226 = scalar_lea.hbm %s3, %s225
          %s227 = sshll.u32 %s220, 4
          %s228 = int_to_ptr.vmem [resolvable:$true] %s227
          %233 = dma.hbm_to_vmem [thread:$0]  %s226, 512, %s228, %s217, 128, 128, 8
        $region32: #{tpu_custom_call.1} parent=27 // pred_fallthru
          _
      $region28: #{tpu_custom_call.1} parent=5 // pred_fallthru
        _
      %p234 = scmp.le.s32.totalorder 1, %s18
      %p235 = scmp.lt.s32.totalorder %s18, 3
      %p236 = pnand %p234, %p235
      %p237 = pneg %p236
      // Predicated region
      $region33: #{tpu_custom_call.1} parent=5 // pred_check
        _
      $region34: #{tpu_custom_call.1} parent=5 // pred_check_branch
        %239 = sbr.rel (%p236) target = $region36
      $region35: #{tpu_custom_call.1} parent=5 // pred_region
        %s240 = ssub.s32 %s18, 1
        // Predicated region
        $region37: #{tpu_custom_call.1} parent=35 // pred_check
          %p241 = pneg %p56
        $region38: #{tpu_custom_call.1} parent=35 // pred_check_branch
          %243 = sbr.rel (%p241) target = $region40
        $region39: #{tpu_custom_call.1} parent=35 // pred_region
          %244 = dma.done [#allocation3], 256
        $region40: #{tpu_custom_call.1} parent=35 // pred_fallthru
          _
        // Predicated region
        $region41: #{tpu_custom_call.1} parent=35 // pred_check
          %p245 = pneg %p77
        $region42: #{tpu_custom_call.1} parent=35 // pred_check_branch
          %247 = sbr.rel (%p245) target = $region44
        $region43: #{tpu_custom_call.1} parent=35 // pred_region
          %248 = dma.done [#allocation6], 256
        $region44: #{tpu_custom_call.1} parent=35 // pred_fallthru
          _
        // Predicated region
        $region45: #{tpu_custom_call.1} parent=35 // pred_check
          %p249 = pneg %p98
        $region46: #{tpu_custom_call.1} parent=35 // pred_check_branch
          %251 = sbr.rel (%p249) target = $region48
        $region47: #{tpu_custom_call.1} parent=35 // pred_region
          %252 = dma.done [#allocation6], 256
        $region48: #{tpu_custom_call.1} parent=35 // pred_fallthru
          _
        %s253 = sand.u32 %s111, 1
        %s254 = scalar_lea.sflag [#allocation9], %s253
        %s255 = sand.u32 %s111, 1
        %s256 = smul.addr %s255, 32
        %s257 = scalar_lea.vmem [#allocation8], %s256
        // Predicated region
        $region49: #{tpu_custom_call.1} parent=35 // pred_check
          %p258 = pneg %p124
        $region50: #{tpu_custom_call.1} parent=35 // pred_check_branch
          %260 = sbr.rel (%p258) target = $region52
        $region51: #{tpu_custom_call.1} parent=35 // pred_region
          %261 = dma.done %s254, 512
        $region52: #{tpu_custom_call.1} parent=35 // pred_fallthru
          _
        %p262 = pneg %p56
        %p263 = pneg %p53
        %p264 = pneg %p77
        %p265 = pneg %p74
        %p266 = pneg %p98
        %p267 = pneg %p95
        %s268 = sand.u32 %s111, 1
        %s269 = scalar_lea.sflag [#allocation9], %s268
        %s270 = sand.u32 %s111, 1
        %s271 = smul.addr %s270, 32
        %s272 = scalar_lea.vmem [#allocation8], %s271
        %p273 = pneg %p124
        %p274 = pneg %p121
        %p275 = pneg %p152
        %p276 = pneg %p149
        %s277 = sand.u32 %s139, 1
        %s278 = scalar_lea.sflag [#allocation4], %s277
        %s279 = sand.u32 %s139, 1
        %s280 = smul.addr %s279, 32
        %s281 = scalar_lea.vmem [#allocation10], %s280
        %s282 = smul.u32 2, %s28
        %s283 = smul.u32 2, %s28
        %v284 = vld [vmem:[#allocation5] sm:$0xff]
        %v285 = vld [vmem:[#allocation5 + $0x8] sm:$0xff]
        %v286 = vld [vmem:[#allocation7] sm:$0xff]
        %v287 = vld [vmem:[#allocation7 + $0x8] sm:$0xff]
        %v288 = vld [vmem:[#allocation2] sm:$0xff]
        %v289 = vld [vmem:[#allocation2 + $0x8] sm:$0xff]
        %v290 = vld [vmem:[%s257] sm:$0xff]
        %v291 = vld [vmem:[%s257 + $0x8] sm:$0xff]
        %s292 = scalar_lea.vmem %s257, 16 [#allocation8]
        %v293 = vld [vmem:[%s292] sm:$0xff]
        %v294 = vld [vmem:[%s292 + $0x8] sm:$0xff]
        %vm295 = vcmask 130048
        %v297 = vsel %vm295, %v284, 0
        %v300 = vsel %vm295, %v285, 0
        %302 = vmatprep.subr.mxu0 0.0
        %303 = vmatpush1.msra.mxu0 %v290
        %304 = vmatprep.subr.mxu0 0.0
        %305 = vmatpush1.msra.mxu0 %v291
        %306 = vmatprep.subr.mxu0 0.0
        %307 = vmatpush1.msra.mxu0 0.0
        %308 = vmatprep.subr.mxu0 0.0
        %309 = vmatpush1.msra.mxu0 0.0
        %310 = vmatprep.subr.mxu0 0.0
        %311 = vmatpush1.msra.mxu0 0.0
        %312 = vmatprep.subr.mxu0 0.0
        %313 = vmatpush1.msra.mxu0 0.0
        %314 = vmatprep.subr.mxu0 0.0
        %315 = vmatpush1.msra.mxu0 0.0
        %316 = vmatprep.subr.mxu0 0.0
        %317 = vmatpush1.msra.mxu0 0.0
        %318 = vmatprep.subr.mxu0 0.0
        %319 = vmatpush1.msra.mxu0 0.0
        %320 = vmatprep.subr.mxu0 0.0
        %321 = vmatpush1.msra.mxu0 0.0
        %322 = vmatprep.subr.mxu0 0.0
        %323 = vmatpush1.msra.mxu0 0.0
        %324 = vmatprep.subr.mxu0 0.0
        %325 = vmatpush1.msra.mxu0 0.0
        %326 = vmatprep.subr.mxu0 0.0
        %327 = vmatpush1.msra.mxu0 0.0
        %328 = vmatprep.subr.mxu0 0.0
        %329 = vmatpush1.msra.mxu0 0.0
        %330 = vmatprep.subr.mxu0 0.0
        %331 = vmatpush1.msra.mxu0 0.0
        %332 = vmatprep.subr.mxu0 0.0
        %333 = vmatpush1.msra.mxu0 0.0
        %334 = vmatprep.subr.mxu0 0.0
        %335 = vmatpush1.msra.mxu0 0.0
        %336 = vmatprep.subr.mxu0 0.0
        %337 = vmatpush1.msra.mxu0 0.0
        %338 = vmatprep.subr.mxu0 0.0
        %339 = vmatpush1.msra.mxu0 0.0
        %340 = vmatprep.subr.mxu0 0.0
        %341 = vmatpush1.msra.mxu0 0.0
        %342 = vmatprep.subr.mxu0 0.0
        %343 = vmatpush1.msra.mxu0 0.0
        %344 = vmatprep.subr.mxu0 0.0
        %345 = vmatpush1.msra.mxu0 0.0
        %346 = vmatprep.subr.mxu0 0.0
        %347 = vmatpush1.msra.mxu0 0.0
        %348 = vmatprep.subr.mxu0 0.0
        %349 = vmatpush1.msra.mxu0 0.0
        %350 = vmatprep.subr.mxu0 0.0
        %351 = vmatpush1.msra.mxu0 0.0
        %352 = vmatprep.subr.mxu0 0.0
        %353 = vmatpush1.msra.mxu0 0.0
        %354 = vmatprep.subr.mxu0 0.0
        %355 = vmatpush1.msra.mxu0 0.0
        %356 = vmatprep.subr.mxu0 0.0
        %357 = vmatpush1.msra.mxu0 0.0
        %358 = vmatprep.subr.mxu0 0.0
        %359 = vmatpush1.msra.mxu0 0.0
        %360 = vmatprep.subr.mxu0 0.0
        %361 = vmatpush1.msra.mxu0 0.0
        %362 = vmatprep.subr.mxu0 0.0
        %363 = vmatpush1.msra.mxu0 0.0
        %364 = vmatprep.subr.mxu0 0.0
        %365 = vmatpush1.msra.mxu0 0.0
        %366 = vmatprep.mubr.f32.mxu0 0.0
        %367 = vmatmul.mubr.f32.gmra.mrb[0].mxu0 %v297
        %v368 = vpop.f32.mrb[0].mxu0
        %v369 = vadd.f32 0.0, %v368
        %v370 = vpop.f32.mrb[0].mxu0
        %371 = vmatprep.mubr.f32.mxu0 0.0
        %372 = vmatmul.mubr.f32.gmra.mrb[0].mxu0 %v300
        %v373 = vpop.f32.mrb[0].mxu0
        %v374 = vadd.f32 0.0, %v373
        %v375 = vpop.f32.mrb[0].mxu0
        %376 = vdwg.mxu0
        %v378 = vsel %vm295, %v286, 0
        %v381 = vsel %vm295, %v287, 0
        %383 = vmatprep.subr.mxu0 0.0
        %384 = vmatpush1.msra.mxu0 %v293
        %385 = vmatprep.subr.mxu0 0.0
        %386 = vmatpush1.msra.mxu0 %v294
        %387 = vmatprep.subr.mxu0 0.0
        %388 = vmatpush1.msra.mxu0 0.0
        %389 = vmatprep.subr.mxu0 0.0
        %390 = vmatpush1.msra.mxu0 0.0
        %391 = vmatprep.subr.mxu0 0.0
        %392 = vmatpush1.msra.mxu0 0.0
        %393 = vmatprep.subr.mxu0 0.0
        %394 = vmatpush1.msra.mxu0 0.0
        %395 = vmatprep.subr.mxu0 0.0
        %396 = vmatpush1.msra.mxu0 0.0
        %397 = vmatprep.subr.mxu0 0.0
        %398 = vmatpush1.msra.mxu0 0.0
        %399 = vmatprep.subr.mxu0 0.0
        %400 = vmatpush1.msra.mxu0 0.0
        %401 = vmatprep.subr.mxu0 0.0
        %402 = vmatpush1.msra.mxu0 0.0
        %403 = vmatprep.subr.mxu0 0.0
        %404 = vmatpush1.msra.mxu0 0.0
        %405 = vmatprep.subr.mxu0 0.0
        %406 = vmatpush1.msra.mxu0 0.0
        %407 = vmatprep.subr.mxu0 0.0
        %408 = vmatpush1.msra.mxu0 0.0
        %409 = vmatprep.subr.mxu0 0.0
        %410 = vmatpush1.msra.mxu0 0.0
        %411 = vmatprep.subr.mxu0 0.0
        %412 = vmatpush1.msra.mxu0 0.0
        %413 = vmatprep.subr.mxu0 0.0
        %414 = vmatpush1.msra.mxu0 0.0
        %415 = vmatprep.subr.mxu0 0.0
        %416 = vmatpush1.msra.mxu0 0.0
        %417 = vmatprep.subr.mxu0 0.0
        %418 = vmatpush1.msra.mxu0 0.0
        %419 = vmatprep.subr.mxu0 0.0
        %420 = vmatpush1.msra.mxu0 0.0
        %421 = vmatprep.subr.mxu0 0.0
        %422 = vmatpush1.msra.mxu0 0.0
        %423 = vmatprep.subr.mxu0 0.0
        %424 = vmatpush1.msra.mxu0 0.0
        %425 = vmatprep.subr.mxu0 0.0
        %426 = vmatpush1.msra.mxu0 0.0
        %427 = vmatprep.subr.mxu0 0.0
        %428 = vmatpush1.msra.mxu0 0.0
        %429 = vmatprep.subr.mxu0 0.0
        %430 = vmatpush1.msra.mxu0 0.0
        %431 = vmatprep.subr.mxu0 0.0
        %432 = vmatpush1.msra.mxu0 0.0
        %433 = vmatprep.subr.mxu0 0.0
        %434 = vmatpush1.msra.mxu0 0.0
        %435 = vmatprep.subr.mxu0 0.0
        %436 = vmatpush1.msra.mxu0 0.0
        %437 = vmatprep.subr.mxu0 0.0
        %438 = vmatpush1.msra.mxu0 0.0
        %439 = vmatprep.subr.mxu0 0.0
        %440 = vmatpush1.msra.mxu0 0.0
        %441 = vmatprep.subr.mxu0 0.0
        %442 = vmatpush1.msra.mxu0 0.0
        %443 = vmatprep.subr.mxu0 0.0
        %444 = vmatpush1.msra.mxu0 0.0
        %445 = vmatprep.subr.mxu0 0.0
        %446 = vmatpush1.msra.mxu0 0.0
        %447 = vmatprep.mubr.f32.mxu0 0.0
        %448 = vmatmul.mubr.f32.gmra.mrb[0].mxu0 %v378
        %v449 = vpop.f32.mrb[0].mxu0
        %v450 = vadd.f32 0.0, %v449
        %v451 = vpop.f32.mrb[0].mxu0
        %452 = vmatprep.mubr.f32.mxu0 0.0
        %453 = vmatmul.mubr.f32.gmra.mrb[0].mxu0 %v381
        %v454 = vpop.f32.mrb[0].mxu0
        %v455 = vadd.f32 0.0, %v454
        %v456 = vpop.f32.mrb[0].mxu0
        %457 = vdwg.mxu0
        %v458 = vadd.f32 %v284, %v286
        %v459 = vadd.f32 %v285, %v287
        %v460 = vadd.f32 %v290, %v293
        %v461 = vadd.f32 %v291, %v294
        %v463 = vsel %vm295, %v458, 0
        %v466 = vsel %vm295, %v459, 0
        %468 = vmatprep.subr.mxu0 0.0
        %469 = vmatpush1.msra.mxu0 %v460
        %470 = vmatprep.subr.mxu0 0.0
        %471 = vmatpush1.msra.mxu0 %v461
        %472 = vmatprep.subr.mxu0 0.0
        %473 = vmatpush1.msra.mxu0 0.0
        %474 = vmatprep.subr.mxu0 0.0
        %475 = vmatpush1.msra.mxu0 0.0
        %476 = vmatprep.subr.mxu0 0.0
        %477 = vmatpush1.msra.mxu0 0.0
        %478 = vmatprep.subr.mxu0 0.0
        %479 = vmatpush1.msra.mxu0 0.0
        %480 = vmatprep.subr.mxu0 0.0
        %481 = vmatpush1.msra.mxu0 0.0
        %482 = vmatprep.subr.mxu0 0.0
        %483 = vmatpush1.msra.mxu0 0.0
        %484 = vmatprep.subr.mxu0 0.0
        %485 = vmatpush1.msra.mxu0 0.0
        %486 = vmatprep.subr.mxu0 0.0
        %487 = vmatpush1.msra.mxu0 0.0
        %488 = vmatprep.subr.mxu0 0.0
        %489 = vmatpush1.msra.mxu0 0.0
        %490 = vmatprep.subr.mxu0 0.0
        %491 = vmatpush1.msra.mxu0 0.0
        %492 = vmatprep.subr.mxu0 0.0
        %493 = vmatpush1.msra.mxu0 0.0
        %494 = vmatprep.subr.mxu0 0.0
        %495 = vmatpush1.msra.mxu0 0.0
        %496 = vmatprep.subr.mxu0 0.0
        %497 = vmatpush1.msra.mxu0 0.0
        %498 = vmatprep.subr.mxu0 0.0
        %499 = vmatpush1.msra.mxu0 0.0
        %500 = vmatprep.subr.mxu0 0.0
        %501 = vmatpush1.msra.mxu0 0.0
        %502 = vmatprep.subr.mxu0 0.0
        %503 = vmatpush1.msra.mxu0 0.0
        %504 = vmatprep.subr.mxu0 0.0
        %505 = vmatpush1.msra.mxu0 0.0
        %506 = vmatprep.subr.mxu0 0.0
        %507 = vmatpush1.msra.mxu0 0.0
        %508 = vmatprep.subr.mxu0 0.0
        %509 = vmatpush1.msra.mxu0 0.0
        %510 = vmatprep.subr.mxu0 0.0
        %511 = vmatpush1.msra.mxu0 0.0
        %512 = vmatprep.subr.mxu0 0.0
        %513 = vmatpush1.msra.mxu0 0.0
        %514 = vmatprep.subr.mxu0 0.0
        %515 = vmatpush1.msra.mxu0 0.0
        %516 = vmatprep.subr.mxu0 0.0
        %517 = vmatpush1.msra.mxu0 0.0
        %518 = vmatprep.subr.mxu0 0.0
        %519 = vmatpush1.msra.mxu0 0.0
        %520 = vmatprep.subr.mxu0 0.0
        %521 = vmatpush1.msra.mxu0 0.0
        %522 = vmatprep.subr.mxu0 0.0
        %523 = vmatpush1.msra.mxu0 0.0
        %524 = vmatprep.subr.mxu0 0.0
        %525 = vmatpush1.msra.mxu0 0.0
        %526 = vmatprep.subr.mxu0 0.0
        %527 = vmatpush1.msra.mxu0 0.0
        %528 = vmatprep.subr.mxu0 0.0
        %529 = vmatpush1.msra.mxu0 0.0
        %530 = vmatprep.subr.mxu0 0.0
        %531 = vmatpush1.msra.mxu0 0.0
        %532 = vmatprep.mubr.f32.mxu0 0.0
        %533 = vmatmul.mubr.f32.gmra.mrb[0].mxu0 %v463
        %v534 = vpop.f32.mrb[0].mxu0
        %v535 = vadd.f32 0.0, %v534
        %v536 = vpop.f32.mrb[0].mxu0
        %537 = vmatprep.mubr.f32.mxu0 0.0
        %538 = vmatmul.mubr.f32.gmra.mrb[0].mxu0 %v466
        %v539 = vpop.f32.mrb[0].mxu0
        %v540 = vadd.f32 0.0, %v539
        %v541 = vpop.f32.mrb[0].mxu0
        %542 = vdwg.mxu0
        %v543 = vsub.f32 %v369, %v450
        %v544 = vsub.f32 %v374, %v455
        %v545 = vsub.f32 %v535, %v369
        %v546 = vsub.f32 %v540, %v374
        %v547 = vsub.f32 %v545, %v450
        %v548 = vsub.f32 %v546, %v455
        %v550 = vsel %vm295, %v543, 0
        %v553 = vsel %vm295, %v544, 0
        %555 = vmatprep.subr.mxu0 0.0
        %556 = vmatpush1.msra.mxu0 %v284
        %557 = vmatprep.subr.mxu0 0.0
        %558 = vmatpush1.msra.mxu0 %v285
        %559 = vmatprep.subr.mxu0 0.0
        %560 = vmatpush1.msra.mxu0 0.0
        %561 = vmatprep.subr.mxu0 0.0
        %562 = vmatpush1.msra.mxu0 0.0
        %563 = vmatprep.subr.mxu0 0.0
        %564 = vmatpush1.msra.mxu0 0.0
        %565 = vmatprep.subr.mxu0 0.0
        %566 = vmatpush1.msra.mxu0 0.0
        %567 = vmatprep.subr.mxu0 0.0
        %568 = vmatpush1.msra.mxu0 0.0
        %569 = vmatprep.subr.mxu0 0.0
        %570 = vmatpush1.msra.mxu0 0.0
        %571 = vmatprep.subr.mxu0 0.0
        %572 = vmatpush1.msra.mxu0 0.0
        %573 = vmatprep.subr.mxu0 0.0
        %574 = vmatpush1.msra.mxu0 0.0
        %575 = vmatprep.subr.mxu0 0.0
        %576 = vmatpush1.msra.mxu0 0.0
        %577 = vmatprep.subr.mxu0 0.0
        %578 = vmatpush1.msra.mxu0 0.0
        %579 = vmatprep.subr.mxu0 0.0
        %580 = vmatpush1.msra.mxu0 0.0
        %581 = vmatprep.subr.mxu0 0.0
        %582 = vmatpush1.msra.mxu0 0.0
        %583 = vmatprep.subr.mxu0 0.0
        %584 = vmatpush1.msra.mxu0 0.0
        %585 = vmatprep.subr.mxu0 0.0
        %586 = vmatpush1.msra.mxu0 0.0
        %587 = vmatprep.subr.mxu0 0.0
        %588 = vmatpush1.msra.mxu0 0.0
        %589 = vmatprep.subr.mxu0 0.0
        %590 = vmatpush1.msra.mxu0 0.0
        %591 = vmatprep.subr.mxu0 0.0
        %592 = vmatpush1.msra.mxu0 0.0
        %593 = vmatprep.subr.mxu0 0.0
        %594 = vmatpush1.msra.mxu0 0.0
        %595 = vmatprep.subr.mxu0 0.0
        %596 = vmatpush1.msra.mxu0 0.0
        %597 = vmatprep.subr.mxu0 0.0
        %598 = vmatpush1.msra.mxu0 0.0
        %599 = vmatprep.subr.mxu0 0.0
        %600 = vmatpush1.msra.mxu0 0.0
        %601 = vmatprep.subr.mxu0 0.0
        %602 = vmatpush1.msra.mxu0 0.0
        %603 = vmatprep.subr.mxu0 0.0
        %604 = vmatpush1.msra.mxu0 0.0
        %605 = vmatprep.subr.mxu0 0.0
        %606 = vmatpush1.msra.mxu0 0.0
        %607 = vmatprep.subr.mxu0 0.0
        %608 = vmatpush1.msra.mxu0 0.0
        %609 = vmatprep.subr.mxu0 0.0
        %610 = vmatpush1.msra.mxu0 0.0
        %611 = vmatprep.subr.mxu0 0.0
        %612 = vmatpush1.msra.mxu0 0.0
        %613 = vmatprep.subr.mxu0 0.0
        %614 = vmatpush1.msra.mxu0 0.0
        %615 = vmatprep.subr.mxu0 0.0
        %616 = vmatpush1.msra.mxu0 0.0
        %617 = vmatprep.subr.mxu0 0.0
        %618 = vmatpush1.msra.mxu0 0.0
        %619 = vmatprep.mubr.f32.mxu0 0.0
        %620 = vmatmul.mubr.f32.gmra.mrb[0].mxu0 %v550
        %v621 = vpop.f32.mrb[0].mxu0
        %v622 = vadd.f32 0.0, %v621
        %v623 = vpop.f32.mrb[0].mxu0
        %624 = vmatprep.mubr.f32.mxu0 0.0
        %625 = vmatmul.mubr.f32.gmra.mrb[0].mxu0 %v553
        %v626 = vpop.f32.mrb[0].mxu0
        %v627 = vadd.f32 0.0, %v626
        %v628 = vpop.f32.mrb[0].mxu0
        %629 = vdwg.mxu0
        %v631 = vsel %vm295, %v547, 0
        %v634 = vsel %vm295, %v548, 0
        %636 = vmatprep.subr.mxu0 0.0
        %637 = vmatpush1.msra.mxu0 %v286
        %638 = vmatprep.subr.mxu0 0.0
        %639 = vmatpush1.msra.mxu0 %v287
        %640 = vmatprep.subr.mxu0 0.0
        %641 = vmatpush1.msra.mxu0 0.0
        %642 = vmatprep.subr.mxu0 0.0
        %643 = vmatpush1.msra.mxu0 0.0
        %644 = vmatprep.subr.mxu0 0.0
        %645 = vmatpush1.msra.mxu0 0.0
        %646 = vmatprep.subr.mxu0 0.0
        %647 = vmatpush1.msra.mxu0 0.0
        %648 = vmatprep.subr.mxu0 0.0
        %649 = vmatpush1.msra.mxu0 0.0
        %650 = vmatprep.subr.mxu0 0.0
        %651 = vmatpush1.msra.mxu0 0.0
        %652 = vmatprep.subr.mxu0 0.0
        %653 = vmatpush1.msra.mxu0 0.0
        %654 = vmatprep.subr.mxu0 0.0
        %655 = vmatpush1.msra.mxu0 0.0
        %656 = vmatprep.subr.mxu0 0.0
        %657 = vmatpush1.msra.mxu0 0.0
        %658 = vmatprep.subr.mxu0 0.0
        %659 = vmatpush1.msra.mxu0 0.0
        %660 = vmatprep.subr.mxu0 0.0
        %661 = vmatpush1.msra.mxu0 0.0
        %662 = vmatprep.subr.mxu0 0.0
        %663 = vmatpush1.msra.mxu0 0.0
        %664 = vmatprep.subr.mxu0 0.0
        %665 = vmatpush1.msra.mxu0 0.0
        %666 = vmatprep.subr.mxu0 0.0
        %667 = vmatpush1.msra.mxu0 0.0
        %668 = vmatprep.subr.mxu0 0.0
        %669 = vmatpush1.msra.mxu0 0.0
        %670 = vmatprep.subr.mxu0 0.0
        %671 = vmatpush1.msra.mxu0 0.0
        %672 = vmatprep.subr.mxu0 0.0
        %673 = vmatpush1.msra.mxu0 0.0
        %674 = vmatprep.subr.mxu0 0.0
        %675 = vmatpush1.msra.mxu0 0.0
        %676 = vmatprep.subr.mxu0 0.0
        %677 = vmatpush1.msra.mxu0 0.0
        %678 = vmatprep.subr.mxu0 0.0
        %679 = vmatpush1.msra.mxu0 0.0
        %680 = vmatprep.subr.mxu0 0.0
        %681 = vmatpush1.msra.mxu0 0.0
        %682 = vmatprep.subr.mxu0 0.0
        %683 = vmatpush1.msra.mxu0 0.0
        %684 = vmatprep.subr.mxu0 0.0
        %685 = vmatpush1.msra.mxu0 0.0
        %686 = vmatprep.subr.mxu0 0.0
        %687 = vmatpush1.msra.mxu0 0.0
        %688 = vmatprep.subr.mxu0 0.0
        %689 = vmatpush1.msra.mxu0 0.0
        %690 = vmatprep.subr.mxu0 0.0
        %691 = vmatpush1.msra.mxu0 0.0
        %692 = vmatprep.subr.mxu0 0.0
        %693 = vmatpush1.msra.mxu0 0.0
        %694 = vmatprep.subr.mxu0 0.0
        %695 = vmatpush1.msra.mxu0 0.0
        %696 = vmatprep.subr.mxu0 0.0
        %697 = vmatpush1.msra.mxu0 0.0
        %698 = vmatprep.subr.mxu0 0.0
        %699 = vmatpush1.msra.mxu0 0.0
        %700 = vmatprep.mubr.f32.mxu0 0.0
        %701 = vmatmul.mubr.f32.gmra.mrb[0].mxu0 %v631
        %v702 = vpop.f32.mrb[0].mxu0
        %v703 = vadd.f32 0.0, %v702
        %v704 = vpop.f32.mrb[0].mxu0
        %705 = vmatprep.mubr.f32.mxu0 0.0
        %706 = vmatmul.mubr.f32.gmra.mrb[0].mxu0 %v634
        %v707 = vpop.f32.mrb[0].mxu0
        %v708 = vadd.f32 0.0, %v707
        %v709 = vpop.f32.mrb[0].mxu0
        %710 = vdwg.mxu0
        %v711 = vadd.f32 %v543, %v547
        %v712 = vadd.f32 %v544, %v548
        %v714 = vsel %vm295, %v711, 0
        %v717 = vsel %vm295, %v712, 0
        %719 = vmatprep.subr.mxu0 0.0
        %720 = vmatpush1.msra.mxu0 %v458
        %721 = vmatprep.subr.mxu0 0.0
        %722 = vmatpush1.msra.mxu0 %v459
        %723 = vmatprep.subr.mxu0 0.0
        %724 = vmatpush1.msra.mxu0 0.0
        %725 = vmatprep.subr.mxu0 0.0
        %726 = vmatpush1.msra.mxu0 0.0
        %727 = vmatprep.subr.mxu0 0.0
        %728 = vmatpush1.msra.mxu0 0.0
        %729 = vmatprep.subr.mxu0 0.0
        %730 = vmatpush1.msra.mxu0 0.0
        %731 = vmatprep.subr.mxu0 0.0
        %732 = vmatpush1.msra.mxu0 0.0
        %733 = vmatprep.subr.mxu0 0.0
        %734 = vmatpush1.msra.mxu0 0.0
        %735 = vmatprep.subr.mxu0 0.0
        %736 = vmatpush1.msra.mxu0 0.0
        %737 = vmatprep.subr.mxu0 0.0
        %738 = vmatpush1.msra.mxu0 0.0
        %739 = vmatprep.subr.mxu0 0.0
        %740 = vmatpush1.msra.mxu0 0.0
        %741 = vmatprep.subr.mxu0 0.0
        %742 = vmatpush1.msra.mxu0 0.0
        %743 = vmatprep.subr.mxu0 0.0
        %744 = vmatpush1.msra.mxu0 0.0
        %745 = vmatprep.subr.mxu0 0.0
        %746 = vmatpush1.msra.mxu0 0.0
        %747 = vmatprep.subr.mxu0 0.0
        %748 = vmatpush1.msra.mxu0 0.0
        %749 = vmatprep.subr.mxu0 0.0
        %750 = vmatpush1.msra.mxu0 0.0
        %751 = vmatprep.subr.mxu0 0.0
        %752 = vmatpush1.msra.mxu0 0.0
        %753 = vmatprep.subr.mxu0 0.0
        %754 = vmatpush1.msra.mxu0 0.0
        %755 = vmatprep.subr.mxu0 0.0
        %756 = vmatpush1.msra.mxu0 0.0
        %757 = vmatprep.subr.mxu0 0.0
        %758 = vmatpush1.msra.mxu0 0.0
        %759 = vmatprep.subr.mxu0 0.0
        %760 = vmatpush1.msra.mxu0 0.0
        %761 = vmatprep.subr.mxu0 0.0
        %762 = vmatpush1.msra.mxu0 0.0
        %763 = vmatprep.subr.mxu0 0.0
        %764 = vmatpush1.msra.mxu0 0.0
        %765 = vmatprep.subr.mxu0 0.0
        %766 = vmatpush1.msra.mxu0 0.0
        %767 = vmatprep.subr.mxu0 0.0
        %768 = vmatpush1.msra.mxu0 0.0
        %769 = vmatprep.subr.mxu0 0.0
        %770 = vmatpush1.msra.mxu0 0.0
        %771 = vmatprep.subr.mxu0 0.0
        %772 = vmatpush1.msra.mxu0 0.0
        %773 = vmatprep.subr.mxu0 0.0
        %774 = vmatpush1.msra.mxu0 0.0
        %775 = vmatprep.subr.mxu0 0.0
        %776 = vmatpush1.msra.mxu0 0.0
        %777 = vmatprep.subr.mxu0 0.0
        %778 = vmatpush1.msra.mxu0 0.0
        %779 = vmatprep.subr.mxu0 0.0
        %780 = vmatpush1.msra.mxu0 0.0
        %781 = vmatprep.subr.mxu0 0.0
        %782 = vmatpush1.msra.mxu0 0.0
        %783 = vmatprep.mubr.f32.mxu0 0.0
        %784 = vmatmul.mubr.f32.gmra.mrb[0].mxu0 %v714
        %v785 = vpop.f32.mrb[0].mxu0
        %v786 = vadd.f32 0.0, %v785
        %v787 = vpop.f32.mrb[0].mxu0
        %788 = vmatprep.mubr.f32.mxu0 0.0
        %789 = vmatmul.mubr.f32.gmra.mrb[0].mxu0 %v717
        %v790 = vpop.f32.mrb[0].mxu0
        %v791 = vadd.f32 0.0, %v790
        %v792 = vpop.f32.mrb[0].mxu0
        %793 = vdwg.mxu0
        %v794 = vsub.f32 %v622, %v703
        %v795 = vsub.f32 %v627, %v708
        %v796 = vsub.f32 %v786, %v622
        %v797 = vsub.f32 %v791, %v627
        %v798 = vsub.f32 %v796, %v703
        %v799 = vsub.f32 %v797, %v708
        %v800 = vmul.f32 %v794, %v288
        %v801 = vmul.f32 %v795, %v289
        %802 = vst.msk [vmem:[%s281] sm:$0xff] %vm295, %v800
        %803 = vst.msk [vmem:[%s281 + $0x8] sm:$0xff] %vm295, %v801
        %v804 = vmul.f32 %v798, %v288
        %v805 = vmul.f32 %v799, %v289
        %s806 = scalar_lea.vmem %s281, 16 [#allocation10]
        %807 = vst.msk [vmem:[%s806] sm:$0xff] %vm295, %v804
        %808 = vst.msk [vmem:[%s806 + $0x8] sm:$0xff] %vm295, %v805
        %s809 = sand.u32 %s139, 1
        %s810 = scalar_lea.sflag [#allocation4], %s809
        %s811 = sand.u32 %s139, 1
        %s812 = smul.addr %s811, 32
        %s813 = scalar_lea.vmem [#allocation10], %s812
        // Predicated region
        $region53: #{tpu_custom_call.1} parent=35 // pred_check
          %p814 = pneg %p149
        $region54: #{tpu_custom_call.1} parent=35 // pred_check_branch
          %816 = sbr.rel (%p814) target = $region56
        $region55: #{tpu_custom_call.1} parent=35 // pred_region
          %s817 = smul.u32 2, %s28
          %s819 = ssub.s32 512, 512
          %820 = vsyncadd %s810, %s819
          %s821 = smul.addr %s27, 4
          %s822 = sadd.s32 %s817, %s821
          %s823 = smul.addr %s822, 128
          %s824 = scalar_lea.hbm %s4, %s823
          %s825 = sshll.u32 %s813, 4
          %s826 = int_to_ptr.vmem [resolvable:$true] %s825
          %831 = dma.vmem_to_hbm [thread:$0]  %s826, 512, %s824, %s810, 128, 128, 8
        $region56: #{tpu_custom_call.1} parent=35 // pred_fallthru
          _
      $region36: #{tpu_custom_call.1} parent=5 // pred_fallthru
        _
      %p832 = scmp.le.s32.totalorder 2, %s18
      // Predicated region
      $region57: #{tpu_custom_call.1} parent=5 // pred_check
        %p833 = pneg %p832
      $region58: #{tpu_custom_call.1} parent=5 // pred_check_branch
        %835 = sbr.rel (%p833) target = $region60
      $region59: #{tpu_custom_call.1} parent=5 // pred_region
        %s836 = ssub.s32 %s18, 2
        // Predicated region
        $region61: #{tpu_custom_call.1} parent=59 // pred_check
          %p837 = pneg %p155
        $region62: #{tpu_custom_call.1} parent=59 // pred_check_branch
          %839 = sbr.rel (%p837) target = $region64
        $region63: #{tpu_custom_call.1} parent=59 // pred_region
          %s840 = sand.u32 %s140, 1
          %s841 = scalar_lea.sflag [#allocation4], %s840
          %s842 = sand.u32 %s140, 1
          %s843 = smul.addr %s842, 32
          %s844 = scalar_lea.vmem [#allocation10], %s843
          %845 = dma.done %s841, 512
        $region64: #{tpu_custom_call.1} parent=59 // pred_fallthru
          _
      $region60: #{tpu_custom_call.1} parent=5 // pred_fallthru
        _
    $region6: #{tpu_custom_call.1} parent=1 // loop_footer
      %s22 = sadd.s32 1, %s18
    $region7: #{tpu_custom_call.1} parent=1 // loop_footer_branch
      %17 = sbr.rel target = $region3
    $region8: #{tpu_custom_call.1} parent=1 // loop_exit
      _
    %846 = vsyncpa [#allocation3], 1
    %s847 = scalar_lea.sflag [#allocation3], 1
    %848 = vsyncpa %s847, 1
    %849 = vsyncpa [#allocation6], 1
    %850 = vsyncpa [#allocation9], 1
    %s851 = scalar_lea.sflag [#allocation9], 1
    %852 = vsyncpa %s851, 1
    %853 = vsyncpa [#allocation4], 1
    %s854 = scalar_lea.sflag [#allocation4], 1
    %855 = vsyncpa %s854, 1

// kernel: tpu_custom_call.1
$region0: #{tpu_custom_call.1}
  #allocation0 [shape = 'u32[]', space=smem, size = 0x4, offset = 0x4, fixed_abs, tag = 'smem constant byte address 0x4 - core index']
  #allocation1 [shape = 'u32[144,128]{1,0:T(1,128)}', space=vmem, size = 0x12000, scoped, tag = 'internal scratch']
  %s0 = inlined_call_operand.hbm [shape: f32[16,16], index: 0, kind: input, shape index: {}]
  %s1 = inlined_call_operand.hbm [shape: f32[16,16], index: 1, kind: input, shape index: {}]
  %s2 = inlined_call_operand.hbm [shape: f32[16,16], index: 2, kind: input, shape index: {}]
  %s3 = inlined_call_operand.hbm [shape: f32[2,2,16,16], index: 3, kind: input, shape index: {}]
  %s4 = inlined_call_operand.hbm [shape: f32[2,2,16,16], index: 4, kind: output, shape index: {}]
  %s5 = sld [smem:[#allocation0]]
  $region65: #{tpu_custom_call.1} parent=0
    _
  %s7 = ssub.s32 1, %s5
  %s8 = scalar_select 0, %s7, %s5
  $region1: #{tpu_custom_call.1} parent=0
    #allocation2 [shape = 'u8[8192]{0}', space=vmem, size = 0x2000, scoped, tag = 'input window, operand 0, single buffered']
    #allocation3 [shape = 's32[2]{0}', space=sflag, size = 0x8, scoped, tag = 'scoped memory for tpu_custom_call.1']
    #allocation4 [shape = 's32[2]{0}', space=sflag, size = 0x8, scoped, tag = 'scoped memory for tpu_custom_call.1']
    #allocation5 [shape = 'u8[8192]{0}', space=vmem, size = 0x2000, scoped, tag = 'input window, operand 1, single buffered']
    #allocation6 [shape = 's32[1]{0}', space=sflag, size = 0x4, scoped, tag = 'scoped memory for tpu_custom_call.1']
    #allocation7 [shape = 'u8[8192]{0}', space=vmem, size = 0x2000, scoped, tag = 'input window, operand 2, single buffered']
    #allocation8 [shape = 'u8[32768]{0}', space=vmem, size = 0x8000, scoped, tag = 'input window, operand 3']
    #allocation9 [shape = 's32[2]{0}', space=sflag, size = 0x8, scoped, tag = 'scoped memory for tpu_custom_call.1']
    #allocation10 [shape = 'u8[32768]{0}', space=vmem, size = 0x8000, scoped, tag = 'output window, operand 0']
    %9 = vsyncpa [#allocation3], 0
    %10 = vsyncpa [#allocation6], 0
    %11 = vsyncpa [#allocation9], 0
    %s12 = scalar_lea.sflag [#allocation9], 1
    %13 = vsyncpa %s12, 0
    %14 = vsyncpa [#allocation4], 0
    %s15 = scalar_lea.sflag [#allocation4], 1
    %16 = vsyncpa %s15, 0
    loop: start=0, step=1, limit=4
    $region2: #{tpu_custom_call.1} parent=1 // loop_pre_header
      _
    $region3: #{tpu_custom_call.1} parent=1 // loop_header
      %s18 = sphi 0, %s22
      %p19 = scmp.ge.s32.totalorder %s18, 4
      %s25 = sphi 0, %s37
      %s26 = sphi 0, %s33
      %s27 = sphi 0, %s25
      %s28 = sphi 0, %s26
      %s29 = sphi 0, %s27
      %s30 = sphi 0, %s28
      %s40 = sphi 0, %s42
      %s43 = sphi 0, %s40
      %s44 = sphi 0, %s43
      %s60 = sphi 0, %s44
      %s64 = sphi 0, %s64
      %s66 = sphi 0, %s64
      %s67 = sphi 0, %s66
      %s81 = sphi 0, %s67
      %s85 = sphi 0, %s85
      %s87 = sphi 0, %s85
      %s88 = sphi 0, %s87
      %s102 = sphi 0, %s88
      %s108 = sphi 0, %s110
      %s111 = sphi 0, %s108
      %s112 = sphi 0, %s111
      %s128 = sphi 0, %s112
      %s136 = sphi 0, %s138
      %s139 = sphi 0, %s136
      %s140 = sphi 0, %s139
      %s156 = sphi 0, %s140
    $region4: #{tpu_custom_call.1} parent=1 // loop_header_branch
      %21 = sbr.rel (%p19) target = $region8
    $region5: #{tpu_custom_call.1} parent=1 // loop_body
      %s23 = ssub.s32 %s18, 1
      %s24 = ssub.s32 %s18, 2
      %s31 = sadd.s32 1, %s26
      %p32 = scmp.ge.s32.totalorder %s31, 1
      %s33 = scalar_select %p32, 0, %s31
      %s34 = sadd.s32 1, %s25
      %s35 = scalar_select %p32, %s34, %s25
      %p36 = scmp.ge.s32.totalorder %s35, 2
      %s37 = scalar_select %p36, 0, %s35
      %s38 = ssub.s32 %s26, %s33
      %p39 = scmp.eq.s32.totalorder %s38, 0
      %s41 = sadd.s32 %s40, 1
      %s42 = scalar_select %p39, %s40, %s41
      %p45 = pneg %p39
      %p46 = scmp.eq.s32.totalorder %s18, 1
      %p47 = por %p45, %p46
      %p48 = scmp.ne.s32.totalorder %s40, %s43
      %p49 = scmp.eq.s32.totalorder %s18, 0
      %p50 = por %p48, %p49
      %p51 = scmp.ne.s32.totalorder %s40, %s43
      %p52 = scmp.eq.s32.totalorder %s23, 1
      %p53 = por %p51, %p52
      %p54 = scmp.ne.s32.totalorder %s43, %s44
      %p55 = scmp.eq.s32.totalorder %s23, 0
      %p56 = por %p54, %p55
      %p57 = scmp.ne.s32.totalorder %s43, %s44
      %p58 = scmp.eq.s32.totalorder %s24, 1
      %p59 = por %p57, %p58
      %p61 = scmp.ne.s32.totalorder %s44, %s60
      %p62 = scmp.eq.s32.totalorder %s24, 0
      %p63 = por %p61, %p62
      %s65 = sadd.s32 %s64, 1
      %p68 = scmp.eq.s32.totalorder %s18, 1
      %p69 = scmp.ne.s32.totalorder %s64, %s66
      %p70 = scmp.eq.s32.totalorder %s18, 0
      %p71 = por %p69, %p70
      %p72 = scmp.ne.s32.totalorder %s64, %s66
      %p73 = scmp.eq.s32.totalorder %s23, 1
      %p74 = por %p72, %p73
      %p75 = scmp.ne.s32.totalorder %s66, %s67
      %p76 = scmp.eq.s32.totalorder %s23, 0
      %p77 = por %p75, %p76
      %p78 = scmp.ne.s32.totalorder %s66, %s67
      %p79 = scmp.eq.s32.totalorder %s24, 1
      %p80 = por %p78, %p79
      %p82 = scmp.ne.s32.totalorder %s67, %s81
      %p83 = scmp.eq.s32.totalorder %s24, 0
      %p84 = por %p82, %p83
      %s86 = sadd.s32 %s85, 1
      %p89 = scmp.eq.s32.totalorder %s18, 1
      %p90 = scmp.ne.s32.totalorder %s85, %s87
      %p91 = scmp.eq.s32.totalorder %s18, 0
      %p92 = por %p90, %p91
      %p93 = scmp.ne.s32.totalorder %s85, %s87
      %p94 = scmp.eq.s32.totalorder %s23, 1
      %p95 = por %p93, %p94
      %p96 = scmp.ne.s32.totalorder %s87, %s88
      %p97 = scmp.eq.s32.totalorder %s23, 0
      %p98 = por %p96, %p97
      %p99 = scmp.ne.s32.totalorder %s87, %s88
      %p100 = scmp.eq.s32.totalorder %s24, 1
      %p101 = por %p99, %p100
      %p103 = scmp.ne.s32.totalorder %s88, %s102
      %p104 = scmp.eq.s32.totalorder %s24, 0
      %p105 = por %p103, %p104
      %s106 = ssub.s32 %s25, %s37
      %p107 = scmp.eq.s32.totalorder %s106, 0
      %s109 = sadd.s32 %s108, 1
      %s110 = scalar_select %p107, %s108, %s109
      %p113 = pneg %p107
      %p114 = scmp.eq.s32.totalorder %s18, 1
      %p115 = por %p113, %p114
      %p116 = scmp.ne.s32.totalorder %s108, %s111
      %p117 = scmp.eq.s32.totalorder %s18, 0
      %p118 = por %p116, %p117
      %p119 = scmp.ne.s32.totalorder %s108, %s111
      %p120 = scmp.eq.s32.totalorder %s23, 1
      %p121 = por %p119, %p120
      %p122 = scmp.ne.s32.totalorder %s111, %s112
      %p123 = scmp.eq.s32.totalorder %s23, 0
      %p124 = por %p122, %p123
      %p125 = scmp.ne.s32.totalorder %s111, %s112
      %p126 = scmp.eq.s32.totalorder %s24, 1
      %p127 = por %p125, %p126
      %p129 = scmp.ne.s32.totalorder %s112, %s128
      %p130 = scmp.eq.s32.totalorder %s24, 0
      %p131 = por %p129, %p130
      %s132 = ssub.s32 %s25, %s37
      %s133 = ssub.s32 %s26, %s33
      %s134 = sor.u32 %s132, %s133
      %p135 = scmp.eq.s32.totalorder %s134, 0
      %s137 = sadd.s32 %s136, 1
      %s138 = scalar_select %p135, %s136, %s137
      %p141 = pneg %p135
      %p142 = scmp.eq.s32.totalorder %s18, 1
      %p143 = por %p141, %p142
      %p144 = scmp.ne.s32.totalorder %s136, %s139
      %p145 = scmp.eq.s32.totalorder %s18, 0
      %p146 = por %p144, %p145
      %p147 = scmp.ne.s32.totalorder %s136, %s139
      %p148 = scmp.eq.s32.totalorder %s23, 1
      %p149 = por %p147, %p148
      %p150 = scmp.ne.s32.totalorder %s139, %s140
      %p151 = scmp.eq.s32.totalorder %s23, 0
      %p152 = por %p150, %p151
      %p153 = scmp.ne.s32.totalorder %s139, %s140
      %p154 = scmp.eq.s32.totalorder %s24, 1
      %p155 = por %p153, %p154
      %p157 = scmp.ne.s32.totalorder %s140, %s156
      %p158 = scmp.eq.s32.totalorder %s24, 0
      %p159 = por %p157, %p158
      %p160 = scmp.le.s32.totalorder 1, %s18
      %p161 = scmp.lt.s32.totalorder %s18, 3
      %p162 = pnand %p160, %p161
      %p163 = pneg %p162
      // Predicated region
      $region9: #{tpu_custom_call.1} parent=5 // pred_check
        _
      $region10: #{tpu_custom_call.1} parent=5 // pred_check_branch
        %165 = sbr.rel (%p162) target = $region12
      $region11: #{tpu_custom_call.1} parent=5 // pred_region
        %s166 = ssub.s32 %s18, 1
        // Predicated region
        $region13: #{tpu_custom_call.1} parent=11 // pred_check
          %p167 = pneg %p56
        $region14: #{tpu_custom_call.1} parent=11 // pred_check_branch
          %169 = sbr.rel (%p167) target = $region16
        $region15: #{tpu_custom_call.1} parent=11 // pred_region
          %s170 = smul.u32 2, %s28
          %s172 = ssub.s32 256, 256
          %173 = vsyncadd [#allocation3], %s172
          %s174 = smul.addr %s170, 128
          %s175 = scalar_lea.hbm %s0, %s174
          %s176 = sshll.u32 [#allocation2], 4
          %s177 = int_to_ptr.vmem [resolvable:$true] %s176
          %182 = dma.hbm_to_vmem [thread:$0]  %s175, 256, %s177, [#allocation3], 128, 128, 8
        $region16: #{tpu_custom_call.1} parent=11 // pred_fallthru
          _
        // Predicated region
        $region17: #{tpu_custom_call.1} parent=11 // pred_check
          %p183 = pneg %p77
        $region18: #{tpu_custom_call.1} parent=11 // pred_check_branch
          %185 = sbr.rel (%p183) target = $region20
        $region19: #{tpu_custom_call.1} parent=11 // pred_region
          %s187 = ssub.s32 256, 256
          %188 = vsyncadd [#allocation6], %s187
          %s189 = sshll.u32 [#allocation5], 4
          %s190 = int_to_ptr.vmem [resolvable:$true] %s189
          %195 = dma.hbm_to_vmem [thread:$0]  %s1, 256, %s190, [#allocation6], 128, 128, 8
        $region20: #{tpu_custom_call.1} parent=11 // pred_fallthru
          _
        // Predicated region
        $region21: #{tpu_custom_call.1} parent=11 // pred_check
          %p196 = pneg %p98
        $region22: #{tpu_custom_call.1} parent=11 // pred_check_branch
          %198 = sbr.rel (%p196) target = $region24
        $region23: #{tpu_custom_call.1} parent=11 // pred_region
          %s200 = ssub.s32 256, 256
          %201 = vsyncadd [#allocation6], %s200
          %s202 = sshll.u32 [#allocation7], 4
          %s203 = int_to_ptr.vmem [resolvable:$true] %s202
          %208 = dma.hbm_to_vmem [thread:$0]  %s2, 256, %s203, [#allocation6], 128, 128, 8
        $region24: #{tpu_custom_call.1} parent=11 // pred_fallthru
          _
      $region12: #{tpu_custom_call.1} parent=5 // pred_fallthru
        _
      %p209 = scmp.lt.s32.totalorder %s18, 2
      // Predicated region
      $region25: #{tpu_custom_call.1} parent=5 // pred_check
        %p210 = pneg %p209
      $region26: #{tpu_custom_call.1} parent=5 // pred_check_branch
        %212 = sbr.rel (%p210) target = $region28
      $region27: #{tpu_custom_call.1} parent=5 // pred_region
        // Predicated region
        $region29: #{tpu_custom_call.1} parent=27 // pred_check
          %p213 = pneg %p118
        $region30: #{tpu_custom_call.1} parent=27 // pred_check_branch
          %215 = sbr.rel (%p213) target = $region32
        $region31: #{tpu_custom_call.1} parent=27 // pred_region
          %s216 = sand.u32 %s108, 1
          %s217 = scalar_lea.sflag [#allocation9], %s216
          %s218 = sand.u32 %s108, 1
          %s219 = smul.addr %s218, 32
          %s220 = scalar_lea.vmem [#allocation8], %s219
          %s222 = ssub.s32 512, 512
          %223 = vsyncadd %s217, %s222
          %s224 = smul.addr %s25, 4
          %s225 = smul.addr %s224, 128
          %s226 = scalar_lea.hbm %s3, %s225
          %s227 = sshll.u32 %s220, 4
          %s228 = int_to_ptr.vmem [resolvable:$true] %s227
          %233 = dma.hbm_to_vmem [thread:$0]  %s226, 512, %s228, %s217, 128, 128, 8
        $region32: #{tpu_custom_call.1} parent=27 // pred_fallthru
          _
      $region28: #{tpu_custom_call.1} parent=5 // pred_fallthru
        _
      %p234 = scmp.le.s32.totalorder 1, %s18
      %p235 = scmp.lt.s32.totalorder %s18, 3
      %p236 = pnand %p234, %p235
      %p237 = pneg %p236
      // Predicated region
      $region33: #{tpu_custom_call.1} parent=5 // pred_check
        _
      $region34: #{tpu_custom_call.1} parent=5 // pred_check_branch
        %239 = sbr.rel (%p236) target = $region36
      $region35: #{tpu_custom_call.1} parent=5 // pred_region
        %s240 = ssub.s32 %s18, 1
        // Predicated region
        $region37: #{tpu_custom_call.1} parent=35 // pred_check
          %p241 = pneg %p56
        $region38: #{tpu_custom_call.1} parent=35 // pred_check_branch
          %243 = sbr.rel (%p241) target = $region40
        $region39: #{tpu_custom_call.1} parent=35 // pred_region
          %244 = dma.done [#allocation3], 256
        $region40: #{tpu_custom_call.1} parent=35 // pred_fallthru
          _
        // Predicated region
        $region41: #{tpu_custom_call.1} parent=35 // pred_check
          %p245 = pneg %p77
        $region42: #{tpu_custom_call.1} parent=35 // pred_check_branch
          %247 = sbr.rel (%p245) target = $region44
        $region43: #{tpu_custom_call.1} parent=35 // pred_region
          %248 = dma.done [#allocation6], 256
        $region44: #{tpu_custom_call.1} parent=35 // pred_fallthru
          _
        // Predicated region
        $region45: #{tpu_custom_call.1} parent=35 // pred_check
          %p249 = pneg %p98
        $region46: #{tpu_custom_call.1} parent=35 // pred_check_branch
          %251 = sbr.rel (%p249) target = $region48
        $region47: #{tpu_custom_call.1} parent=35 // pred_region
          %252 = dma.done [#allocation6], 256
        $region48: #{tpu_custom_call.1} parent=35 // pred_fallthru
          _
        %s253 = sand.u32 %s111, 1
        %s254 = scalar_lea.sflag [#allocation9], %s253
        %s255 = sand.u32 %s111, 1
        %s256 = smul.addr %s255, 32
        %s257 = scalar_lea.vmem [#allocation8], %s256
        // Predicated region
        $region49: #{tpu_custom_call.1} parent=35 // pred_check
          %p258 = pneg %p124
        $region50: #{tpu_custom_call.1} parent=35 // pred_check_branch
          %260 = sbr.rel (%p258) target = $region52
        $region51: #{tpu_custom_call.1} parent=35 // pred_region
          %261 = dma.done %s254, 512
        $region52: #{tpu_custom_call.1} parent=35 // pred_fallthru
          _
        %p262 = pneg %p56
        %p263 = pneg %p53
        %p264 = pneg %p77
        %p265 = pneg %p74
        %p266 = pneg %p98
        %p267 = pneg %p95
        %s268 = sand.u32 %s111, 1
        %s269 = scalar_lea.sflag [#allocation9], %s268
        %s270 = sand.u32 %s111, 1
        %s271 = smul.addr %s270, 32
        %s272 = scalar_lea.vmem [#allocation8], %s271
        %p273 = pneg %p124
        %p274 = pneg %p121
        %p275 = pneg %p152
        %p276 = pneg %p149
        %s277 = sand.u32 %s139, 1
        %s278 = scalar_lea.sflag [#allocation4], %s277
        %s279 = sand.u32 %s139, 1
        %s280 = smul.addr %s279, 32
        %s281 = scalar_lea.vmem [#allocation10], %s280
        %s282 = smul.u32 2, %s28
        %s283 = smul.u32 2, %s28
        %v284 = vld [vmem:[#allocation5] sm:$0xff]
        %v285 = vld [vmem:[#allocation5 + $0x8] sm:$0xff]
        %v286 = vld [vmem:[#allocation7] sm:$0xff]
        %v287 = vld [vmem:[#allocation7 + $0x8] sm:$0xff]
        %v288 = vld [vmem:[#allocation2] sm:$0xff]
        %v289 = vld [vmem:[#allocation2 + $0x8] sm:$0xff]
        %v290 = vld [vmem:[%s257] sm:$0xff]
        %v291 = vld [vmem:[%s257 + $0x8] sm:$0xff]
        %s292 = scalar_lea.vmem %s257, 16 [#allocation8]
        %v293 = vld [vmem:[%s292] sm:$0xff]
        %v294 = vld [vmem:[%s292 + $0x8] sm:$0xff]
        %vm295 = vcmask 130048
        %v297 = vsel %vm295, %v284, 0
        %v300 = vsel %vm295, %v285, 0
        %302 = vmatprep.subr.mxu0 0.0
        %303 = vmatpush1.msra.mxu0 %v290
        %304 = vmatprep.subr.mxu0 0.0
        %305 = vmatpush1.msra.mxu0 %v291
        %306 = vmatprep.subr.mxu0 0.0
        %307 = vmatpush1.msra.mxu0 0.0
        %308 = vmatprep.subr.mxu0 0.0
        %309 = vmatpush1.msra.mxu0 0.0
        %310 = vmatprep.subr.mxu0 0.0
        %311 = vmatpush1.msra.mxu0 0.0
        %312 = vmatprep.subr.mxu0 0.0
        %313 = vmatpush1.msra.mxu0 0.0
        %314 = vmatprep.subr.mxu0 0.0
        %315 = vmatpush1.msra.mxu0 0.0
        %316 = vmatprep.subr.mxu0 0.0
        %317 = vmatpush1.msra.mxu0 0.0
        %318 = vmatprep.subr.mxu0 0.0
        %319 = vmatpush1.msra.mxu0 0.0
        %320 = vmatprep.subr.mxu0 0.0
        %321 = vmatpush1.msra.mxu0 0.0
        %322 = vmatprep.subr.mxu0 0.0
        %323 = vmatpush1.msra.mxu0 0.0
        %324 = vmatprep.subr.mxu0 0.0
        %325 = vmatpush1.msra.mxu0 0.0
        %326 = vmatprep.subr.mxu0 0.0
        %327 = vmatpush1.msra.mxu0 0.0
        %328 = vmatprep.subr.mxu0 0.0
        %329 = vmatpush1.msra.mxu0 0.0
        %330 = vmatprep.subr.mxu0 0.0
        %331 = vmatpush1.msra.mxu0 0.0
        %332 = vmatprep.subr.mxu0 0.0
        %333 = vmatpush1.msra.mxu0 0.0
        %334 = vmatprep.subr.mxu0 0.0
        %335 = vmatpush1.msra.mxu0 0.0
        %336 = vmatprep.subr.mxu0 0.0
        %337 = vmatpush1.msra.mxu0 0.0
        %338 = vmatprep.subr.mxu0 0.0
        %339 = vmatpush1.msra.mxu0 0.0
        %340 = vmatprep.subr.mxu0 0.0
        %341 = vmatpush1.msra.mxu0 0.0
        %342 = vmatprep.subr.mxu0 0.0
        %343 = vmatpush1.msra.mxu0 0.0
        %344 = vmatprep.subr.mxu0 0.0
        %345 = vmatpush1.msra.mxu0 0.0
        %346 = vmatprep.subr.mxu0 0.0
        %347 = vmatpush1.msra.mxu0 0.0
        %348 = vmatprep.subr.mxu0 0.0
        %349 = vmatpush1.msra.mxu0 0.0
        %350 = vmatprep.subr.mxu0 0.0
        %351 = vmatpush1.msra.mxu0 0.0
        %352 = vmatprep.subr.mxu0 0.0
        %353 = vmatpush1.msra.mxu0 0.0
        %354 = vmatprep.subr.mxu0 0.0
        %355 = vmatpush1.msra.mxu0 0.0
        %356 = vmatprep.subr.mxu0 0.0
        %357 = vmatpush1.msra.mxu0 0.0
        %358 = vmatprep.subr.mxu0 0.0
        %359 = vmatpush1.msra.mxu0 0.0
        %360 = vmatprep.subr.mxu0 0.0
        %361 = vmatpush1.msra.mxu0 0.0
        %362 = vmatprep.subr.mxu0 0.0
        %363 = vmatpush1.msra.mxu0 0.0
        %364 = vmatprep.subr.mxu0 0.0
        %365 = vmatpush1.msra.mxu0 0.0
        %366 = vmatprep.mubr.f32.mxu0 0.0
        %367 = vmatmul.mubr.f32.gmra.mrb[0].mxu0 %v297
        %v368 = vpop.f32.mrb[0].mxu0
        %v369 = vadd.f32 0.0, %v368
        %v370 = vpop.f32.mrb[0].mxu0
        %371 = vmatprep.mubr.f32.mxu0 0.0
        %372 = vmatmul.mubr.f32.gmra.mrb[0].mxu0 %v300
        %v373 = vpop.f32.mrb[0].mxu0
        %v374 = vadd.f32 0.0, %v373
        %v375 = vpop.f32.mrb[0].mxu0
        %376 = vdwg.mxu0
        %v378 = vsel %vm295, %v286, 0
        %v381 = vsel %vm295, %v287, 0
        %383 = vmatprep.subr.mxu0 0.0
        %384 = vmatpush1.msra.mxu0 %v293
        %385 = vmatprep.subr.mxu0 0.0
        %386 = vmatpush1.msra.mxu0 %v294
        %387 = vmatprep.subr.mxu0 0.0
        %388 = vmatpush1.msra.mxu0 0.0
        %389 = vmatprep.subr.mxu0 0.0
        %390 = vmatpush1.msra.mxu0 0.0
        %391 = vmatprep.subr.mxu0 0.0
        %392 = vmatpush1.msra.mxu0 0.0
        %393 = vmatprep.subr.mxu0 0.0
        %394 = vmatpush1.msra.mxu0 0.0
        %395 = vmatprep.subr.mxu0 0.0
        %396 = vmatpush1.msra.mxu0 0.0
        %397 = vmatprep.subr.mxu0 0.0
        %398 = vmatpush1.msra.mxu0 0.0
        %399 = vmatprep.subr.mxu0 0.0
        %400 = vmatpush1.msra.mxu0 0.0
        %401 = vmatprep.subr.mxu0 0.0
        %402 = vmatpush1.msra.mxu0 0.0
        %403 = vmatprep.subr.mxu0 0.0
        %404 = vmatpush1.msra.mxu0 0.0
        %405 = vmatprep.subr.mxu0 0.0
        %406 = vmatpush1.msra.mxu0 0.0
        %407 = vmatprep.subr.mxu0 0.0
        %408 = vmatpush1.msra.mxu0 0.0
        %409 = vmatprep.subr.mxu0 0.0
        %410 = vmatpush1.msra.mxu0 0.0
        %411 = vmatprep.subr.mxu0 0.0
        %412 = vmatpush1.msra.mxu0 0.0
        %413 = vmatprep.subr.mxu0 0.0
        %414 = vmatpush1.msra.mxu0 0.0
        %415 = vmatprep.subr.mxu0 0.0
        %416 = vmatpush1.msra.mxu0 0.0
        %417 = vmatprep.subr.mxu0 0.0
        %418 = vmatpush1.msra.mxu0 0.0
        %419 = vmatprep.subr.mxu0 0.0
        %420 = vmatpush1.msra.mxu0 0.0
        %421 = vmatprep.subr.mxu0 0.0
        %422 = vmatpush1.msra.mxu0 0.0
        %423 = vmatprep.subr.mxu0 0.0
        %424 = vmatpush1.msra.mxu0 0.0
        %425 = vmatprep.subr.mxu0 0.0
        %426 = vmatpush1.msra.mxu0 0.0
        %427 = vmatprep.subr.mxu0 0.0
        %428 = vmatpush1.msra.mxu0 0.0
        %429 = vmatprep.subr.mxu0 0.0
        %430 = vmatpush1.msra.mxu0 0.0
        %431 = vmatprep.subr.mxu0 0.0
        %432 = vmatpush1.msra.mxu0 0.0
        %433 = vmatprep.subr.mxu0 0.0
        %434 = vmatpush1.msra.mxu0 0.0
        %435 = vmatprep.subr.mxu0 0.0
        %436 = vmatpush1.msra.mxu0 0.0
        %437 = vmatprep.subr.mxu0 0.0
        %438 = vmatpush1.msra.mxu0 0.0
        %439 = vmatprep.subr.mxu0 0.0
        %440 = vmatpush1.msra.mxu0 0.0
        %441 = vmatprep.subr.mxu0 0.0
        %442 = vmatpush1.msra.mxu0 0.0
        %443 = vmatprep.subr.mxu0 0.0
        %444 = vmatpush1.msra.mxu0 0.0
        %445 = vmatprep.subr.mxu0 0.0
        %446 = vmatpush1.msra.mxu0 0.0
        %447 = vmatprep.mubr.f32.mxu0 0.0
        %448 = vmatmul.mubr.f32.gmra.mrb[0].mxu0 %v378
        %v449 = vpop.f32.mrb[0].mxu0
        %v450 = vadd.f32 0.0, %v449
        %v451 = vpop.f32.mrb[0].mxu0
        %452 = vmatprep.mubr.f32.mxu0 0.0
        %453 = vmatmul.mubr.f32.gmra.mrb[0].mxu0 %v381
        %v454 = vpop.f32.mrb[0].mxu0
        %v455 = vadd.f32 0.0, %v454
        %v456 = vpop.f32.mrb[0].mxu0
        %457 = vdwg.mxu0
        %v458 = vadd.f32 %v284, %v286
        %v459 = vadd.f32 %v285, %v287
        %v460 = vadd.f32 %v290, %v293
        %v461 = vadd.f32 %v291, %v294
        %v463 = vsel %vm295, %v458, 0
        %v466 = vsel %vm295, %v459, 0
        %468 = vmatprep.subr.mxu0 0.0
        %469 = vmatpush1.msra.mxu0 %v460
        %470 = vmatprep.subr.mxu0 0.0
        %471 = vmatpush1.msra.mxu0 %v461
        %472 = vmatprep.subr.mxu0 0.0
        %473 = vmatpush1.msra.mxu0 0.0
        %474 = vmatprep.subr.mxu0 0.0
        %475 = vmatpush1.msra.mxu0 0.0
        %476 = vmatprep.subr.mxu0 0.0
        %477 = vmatpush1.msra.mxu0 0.0
        %478 = vmatprep.subr.mxu0 0.0
        %479 = vmatpush1.msra.mxu0 0.0
        %480 = vmatprep.subr.mxu0 0.0
        %481 = vmatpush1.msra.mxu0 0.0
        %482 = vmatprep.subr.mxu0 0.0
        %483 = vmatpush1.msra.mxu0 0.0
        %484 = vmatprep.subr.mxu0 0.0
        %485 = vmatpush1.msra.mxu0 0.0
        %486 = vmatprep.subr.mxu0 0.0
        %487 = vmatpush1.msra.mxu0 0.0
        %488 = vmatprep.subr.mxu0 0.0
        %489 = vmatpush1.msra.mxu0 0.0
        %490 = vmatprep.subr.mxu0 0.0
        %491 = vmatpush1.msra.mxu0 0.0
        %492 = vmatprep.subr.mxu0 0.0
        %493 = vmatpush1.msra.mxu0 0.0
        %494 = vmatprep.subr.mxu0 0.0
        %495 = vmatpush1.msra.mxu0 0.0
        %496 = vmatprep.subr.mxu0 0.0
        %497 = vmatpush1.msra.mxu0 0.0
        %498 = vmatprep.subr.mxu0 0.0
        %499 = vmatpush1.msra.mxu0 0.0
        %500 = vmatprep.subr.mxu0 0.0
        %501 = vmatpush1.msra.mxu0 0.0
        %502 = vmatprep.subr.mxu0 0.0
        %503 = vmatpush1.msra.mxu0 0.0
        %504 = vmatprep.subr.mxu0 0.0
        %505 = vmatpush1.msra.mxu0 0.0
        %506 = vmatprep.subr.mxu0 0.0
        %507 = vmatpush1.msra.mxu0 0.0
        %508 = vmatprep.subr.mxu0 0.0
        %509 = vmatpush1.msra.mxu0 0.0
        %510 = vmatprep.subr.mxu0 0.0
        %511 = vmatpush1.msra.mxu0 0.0
        %512 = vmatprep.subr.mxu0 0.0
        %513 = vmatpush1.msra.mxu0 0.0
        %514 = vmatprep.subr.mxu0 0.0
        %515 = vmatpush1.msra.mxu0 0.0
        %516 = vmatprep.subr.mxu0 0.0
        %517 = vmatpush1.msra.mxu0 0.0
        %518 = vmatprep.subr.mxu0 0.0
        %519 = vmatpush1.msra.mxu0 0.0
        %520 = vmatprep.subr.mxu0 0.0
        %521 = vmatpush1.msra.mxu0 0.0
        %522 = vmatprep.subr.mxu0 0.0
        %523 = vmatpush1.msra.mxu0 0.0
        %524 = vmatprep.subr.mxu0 0.0
        %525 = vmatpush1.msra.mxu0 0.0
        %526 = vmatprep.subr.mxu0 0.0
        %527 = vmatpush1.msra.mxu0 0.0
        %528 = vmatprep.subr.mxu0 0.0
        %529 = vmatpush1.msra.mxu0 0.0
        %530 = vmatprep.subr.mxu0 0.0
        %531 = vmatpush1.msra.mxu0 0.0
        %532 = vmatprep.mubr.f32.mxu0 0.0
        %533 = vmatmul.mubr.f32.gmra.mrb[0].mxu0 %v463
        %v534 = vpop.f32.mrb[0].mxu0
        %v535 = vadd.f32 0.0, %v534
        %v536 = vpop.f32.mrb[0].mxu0
        %537 = vmatprep.mubr.f32.mxu0 0.0
        %538 = vmatmul.mubr.f32.gmra.mrb[0].mxu0 %v466
        %v539 = vpop.f32.mrb[0].mxu0
        %v540 = vadd.f32 0.0, %v539
        %v541 = vpop.f32.mrb[0].mxu0
        %542 = vdwg.mxu0
        %v543 = vsub.f32 %v369, %v450
        %v544 = vsub.f32 %v374, %v455
        %v545 = vsub.f32 %v535, %v369
        %v546 = vsub.f32 %v540, %v374
        %v547 = vsub.f32 %v545, %v450
        %v548 = vsub.f32 %v546, %v455
        %v550 = vsel %vm295, %v543, 0
        %v553 = vsel %vm295, %v544, 0
        %555 = vmatprep.subr.mxu0 0.0
        %556 = vmatpush1.msra.mxu0 %v284
        %557 = vmatprep.subr.mxu0 0.0
        %558 = vmatpush1.msra.mxu0 %v285
        %559 = vmatprep.subr.mxu0 0.0
        %560 = vmatpush1.msra.mxu0 0.0
        %561 = vmatprep.subr.mxu0 0.0
        %562 = vmatpush1.msra.mxu0 0.0
        %563 = vmatprep.subr.mxu0 0.0
        %564 = vmatpush1.msra.mxu0 0.0
        %565 = vmatprep.subr.mxu0 0.0
        %566 = vmatpush1.msra.mxu0 0.0
        %567 = vmatprep.subr.mxu0 0.0
        %568 = vmatpush1.msra.mxu0 0.0
        %569 = vmatprep.subr.mxu0 0.0
        %570 = vmatpush1.msra.mxu0 0.0
        %571 = vmatprep.subr.mxu0 0.0
        %572 = vmatpush1.msra.mxu0 0.0
        %573 = vmatprep.subr.mxu0 0.0
        %574 = vmatpush1.msra.mxu0 0.0
        %575 = vmatprep.subr.mxu0 0.0
        %576 = vmatpush1.msra.mxu0 0.0
        %577 = vmatprep.subr.mxu0 0.0
        %578 = vmatpush1.msra.mxu0 0.0
        %579 = vmatprep.subr.mxu0 0.0
        %580 = vmatpush1.msra.mxu0 0.0
        %581 = vmatprep.subr.mxu0 0.0
        %582 = vmatpush1.msra.mxu0 0.0
        %583 = vmatprep.subr.mxu0 0.0
        %584 = vmatpush1.msra.mxu0 0.0
        %585 = vmatprep.subr.mxu0 0.0
        %586 = vmatpush1.msra.mxu0 0.0
        %587 = vmatprep.subr.mxu0 0.0
        %588 = vmatpush1.msra.mxu0 0.0
        %589 = vmatprep.subr.mxu0 0.0
        %590 = vmatpush1.msra.mxu0 0.0
        %591 = vmatprep.subr.mxu0 0.0
        %592 = vmatpush1.msra.mxu0 0.0
        %593 = vmatprep.subr.mxu0 0.0
        %594 = vmatpush1.msra.mxu0 0.0
        %595 = vmatprep.subr.mxu0 0.0
        %596 = vmatpush1.msra.mxu0 0.0
        %597 = vmatprep.subr.mxu0 0.0
        %598 = vmatpush1.msra.mxu0 0.0
        %599 = vmatprep.subr.mxu0 0.0
        %600 = vmatpush1.msra.mxu0 0.0
        %601 = vmatprep.subr.mxu0 0.0
        %602 = vmatpush1.msra.mxu0 0.0
        %603 = vmatprep.subr.mxu0 0.0
        %604 = vmatpush1.msra.mxu0 0.0
        %605 = vmatprep.subr.mxu0 0.0
        %606 = vmatpush1.msra.mxu0 0.0
        %607 = vmatprep.subr.mxu0 0.0
        %608 = vmatpush1.msra.mxu0 0.0
        %609 = vmatprep.subr.mxu0 0.0
        %610 = vmatpush1.msra.mxu0 0.0
        %611 = vmatprep.subr.mxu0 0.0
        %612 = vmatpush1.msra.mxu0 0.0
        %613 = vmatprep.subr.mxu0 0.0
        %614 = vmatpush1.msra.mxu0 0.0
        %615 = vmatprep.subr.mxu0 0.0
        %616 = vmatpush1.msra.mxu0 0.0
        %617 = vmatprep.subr.mxu0 0.0
        %618 = vmatpush1.msra.mxu0 0.0
        %619 = vmatprep.mubr.f32.mxu0 0.0
        %620 = vmatmul.mubr.f32.gmra.mrb[0].mxu0 %v550
        %v621 = vpop.f32.mrb[0].mxu0
        %v622 = vadd.f32 0.0, %v621
        %v623 = vpop.f32.mrb[0].mxu0
        %624 = vmatprep.mubr.f32.mxu0 0.0
        %625 = vmatmul.mubr.f32.gmra.mrb[0].mxu0 %v553
        %v626 = vpop.f32.mrb[0].mxu0
        %v627 = vadd.f32 0.0, %v626
        %v628 = vpop.f32.mrb[0].mxu0
        %629 = vdwg.mxu0
        %v631 = vsel %vm295, %v547, 0
        %v634 = vsel %vm295, %v548, 0
        %636 = vmatprep.subr.mxu0 0.0
        %637 = vmatpush1.msra.mxu0 %v286
        %638 = vmatprep.subr.mxu0 0.0
        %639 = vmatpush1.msra.mxu0 %v287
        %640 = vmatprep.subr.mxu0 0.0
        %641 = vmatpush1.msra.mxu0 0.0
        %642 = vmatprep.subr.mxu0 0.0
        %643 = vmatpush1.msra.mxu0 0.0
        %644 = vmatprep.subr.mxu0 0.0
        %645 = vmatpush1.msra.mxu0 0.0
        %646 = vmatprep.subr.mxu0 0.0
        %647 = vmatpush1.msra.mxu0 0.0
        %648 = vmatprep.subr.mxu0 0.0
        %649 = vmatpush1.msra.mxu0 0.0
        %650 = vmatprep.subr.mxu0 0.0
        %651 = vmatpush1.msra.mxu0 0.0
        %652 = vmatprep.subr.mxu0 0.0
        %653 = vmatpush1.msra.mxu0 0.0
        %654 = vmatprep.subr.mxu0 0.0
        %655 = vmatpush1.msra.mxu0 0.0
        %656 = vmatprep.subr.mxu0 0.0
        %657 = vmatpush1.msra.mxu0 0.0
        %658 = vmatprep.subr.mxu0 0.0
        %659 = vmatpush1.msra.mxu0 0.0
        %660 = vmatprep.subr.mxu0 0.0
        %661 = vmatpush1.msra.mxu0 0.0
        %662 = vmatprep.subr.mxu0 0.0
        %663 = vmatpush1.msra.mxu0 0.0
        %664 = vmatprep.subr.mxu0 0.0
        %665 = vmatpush1.msra.mxu0 0.0
        %666 = vmatprep.subr.mxu0 0.0
        %667 = vmatpush1.msra.mxu0 0.0
        %668 = vmatprep.subr.mxu0 0.0
        %669 = vmatpush1.msra.mxu0 0.0
        %670 = vmatprep.subr.mxu0 0.0
        %671 = vmatpush1.msra.mxu0 0.0
        %672 = vmatprep.subr.mxu0 0.0
        %673 = vmatpush1.msra.mxu0 0.0
        %674 = vmatprep.subr.mxu0 0.0
        %675 = vmatpush1.msra.mxu0 0.0
        %676 = vmatprep.subr.mxu0 0.0
        %677 = vmatpush1.msra.mxu0 0.0
        %678 = vmatprep.subr.mxu0 0.0
        %679 = vmatpush1.msra.mxu0 0.0
        %680 = vmatprep.subr.mxu0 0.0
        %681 = vmatpush1.msra.mxu0 0.0
        %682 = vmatprep.subr.mxu0 0.0
        %683 = vmatpush1.msra.mxu0 0.0
        %684 = vmatprep.subr.mxu0 0.0
        %685 = vmatpush1.msra.mxu0 0.0
        %686 = vmatprep.subr.mxu0 0.0
        %687 = vmatpush1.msra.mxu0 0.0
        %688 = vmatprep.subr.mxu0 0.0
        %689 = vmatpush1.msra.mxu0 0.0
        %690 = vmatprep.subr.mxu0 0.0
        %691 = vmatpush1.msra.mxu0 0.0
        %692 = vmatprep.subr.mxu0 0.0
        %693 = vmatpush1.msra.mxu0 0.0
        %694 = vmatprep.subr.mxu0 0.0
        %695 = vmatpush1.msra.mxu0 0.0
        %696 = vmatprep.subr.mxu0 0.0
        %697 = vmatpush1.msra.mxu0 0.0
        %698 = vmatprep.subr.mxu0 0.0
        %699 = vmatpush1.msra.mxu0 0.0
        %700 = vmatprep.mubr.f32.mxu0 0.0
        %701 = vmatmul.mubr.f32.gmra.mrb[0].mxu0 %v631
        %v702 = vpop.f32.mrb[0].mxu0
        %v703 = vadd.f32 0.0, %v702
        %v704 = vpop.f32.mrb[0].mxu0
        %705 = vmatprep.mubr.f32.mxu0 0.0
        %706 = vmatmul.mubr.f32.gmra.mrb[0].mxu0 %v634
        %v707 = vpop.f32.mrb[0].mxu0
        %v708 = vadd.f32 0.0, %v707
        %v709 = vpop.f32.mrb[0].mxu0
        %710 = vdwg.mxu0
        %v711 = vadd.f32 %v543, %v547
        %v712 = vadd.f32 %v544, %v548
        %v714 = vsel %vm295, %v711, 0
        %v717 = vsel %vm295, %v712, 0
        %719 = vmatprep.subr.mxu0 0.0
        %720 = vmatpush1.msra.mxu0 %v458
        %721 = vmatprep.subr.mxu0 0.0
        %722 = vmatpush1.msra.mxu0 %v459
        %723 = vmatprep.subr.mxu0 0.0
        %724 = vmatpush1.msra.mxu0 0.0
        %725 = vmatprep.subr.mxu0 0.0
        %726 = vmatpush1.msra.mxu0 0.0
        %727 = vmatprep.subr.mxu0 0.0
        %728 = vmatpush1.msra.mxu0 0.0
        %729 = vmatprep.subr.mxu0 0.0
        %730 = vmatpush1.msra.mxu0 0.0
        %731 = vmatprep.subr.mxu0 0.0
        %732 = vmatpush1.msra.mxu0 0.0
        %733 = vmatprep.subr.mxu0 0.0
        %734 = vmatpush1.msra.mxu0 0.0
        %735 = vmatprep.subr.mxu0 0.0
        %736 = vmatpush1.msra.mxu0 0.0
        %737 = vmatprep.subr.mxu0 0.0
        %738 = vmatpush1.msra.mxu0 0.0
        %739 = vmatprep.subr.mxu0 0.0
        %740 = vmatpush1.msra.mxu0 0.0
        %741 = vmatprep.subr.mxu0 0.0
        %742 = vmatpush1.msra.mxu0 0.0
        %743 = vmatprep.subr.mxu0 0.0
        %744 = vmatpush1.msra.mxu0 0.0
        %745 = vmatprep.subr.mxu0 0.0
        %746 = vmatpush1.msra.mxu0 0.0
        %747 = vmatprep.subr.mxu0 0.0
        %748 = vmatpush1.msra.mxu0 0.0
        %749 = vmatprep.subr.mxu0 0.0
        %750 = vmatpush1.msra.mxu0 0.0
        %751 = vmatprep.subr.mxu0 0.0
        %752 = vmatpush1.msra.mxu0 0.0
        %753 = vmatprep.subr.mxu0 0.0
        %754 = vmatpush1.msra.mxu0 0.0
        %755 = vmatprep.subr.mxu0 0.0
        %756 = vmatpush1.msra.mxu0 0.0
        %757 = vmatprep.subr.mxu0 0.0
        %758 = vmatpush1.msra.mxu0 0.0
        %759 = vmatprep.subr.mxu0 0.0
        %760 = vmatpush1.msra.mxu0 0.0
        %761 = vmatprep.subr.mxu0 0.0
        %762 = vmatpush1.msra.mxu0 0.0
        %763 = vmatprep.subr.mxu0 0.0
        %764 = vmatpush1.msra.mxu0 0.0
        %765 = vmatprep.subr.mxu0 0.0
        %766 = vmatpush1.msra.mxu0 0.0
        %767 = vmatprep.subr.mxu0 0.0
        %768 = vmatpush1.msra.mxu0 0.0
        %769 = vmatprep.subr.mxu0 0.0
        %770 = vmatpush1.msra.mxu0 0.0
        %771 = vmatprep.subr.mxu0 0.0
        %772 = vmatpush1.msra.mxu0 0.0
        %773 = vmatprep.subr.mxu0 0.0
        %774 = vmatpush1.msra.mxu0 0.0
        %775 = vmatprep.subr.mxu0 0.0
        %776 = vmatpush1.msra.mxu0 0.0
        %777 = vmatprep.subr.mxu0 0.0
        %778 = vmatpush1.msra.mxu0 0.0
        %779 = vmatprep.subr.mxu0 0.0
        %780 = vmatpush1.msra.mxu0 0.0
        %781 = vmatprep.subr.mxu0 0.0
        %782 = vmatpush1.msra.mxu0 0.0
        %783 = vmatprep.mubr.f32.mxu0 0.0
        %784 = vmatmul.mubr.f32.gmra.mrb[0].mxu0 %v714
        %v785 = vpop.f32.mrb[0].mxu0
        %v786 = vadd.f32 0.0, %v785
        %v787 = vpop.f32.mrb[0].mxu0
        %788 = vmatprep.mubr.f32.mxu0 0.0
        %789 = vmatmul.mubr.f32.gmra.mrb[0].mxu0 %v717
        %v790 = vpop.f32.mrb[0].mxu0
        %v791 = vadd.f32 0.0, %v790
        %v792 = vpop.f32.mrb[0].mxu0
        %793 = vdwg.mxu0
        %v794 = vsub.f32 %v622, %v703
        %v795 = vsub.f32 %v627, %v708
        %v796 = vsub.f32 %v786, %v622
        %v797 = vsub.f32 %v791, %v627
        %v798 = vsub.f32 %v796, %v703
        %v799 = vsub.f32 %v797, %v708
        %v800 = vmul.f32 %v794, %v288
        %v801 = vmul.f32 %v795, %v289
        %802 = vst.msk [vmem:[%s281] sm:$0xff] %vm295, %v800
        %803 = vst.msk [vmem:[%s281 + $0x8] sm:$0xff] %vm295, %v801
        %v804 = vmul.f32 %v798, %v288
        %v805 = vmul.f32 %v799, %v289
        %s806 = scalar_lea.vmem %s281, 16 [#allocation10]
        %807 = vst.msk [vmem:[%s806] sm:$0xff] %vm295, %v804
        %808 = vst.msk [vmem:[%s806 + $0x8] sm:$0xff] %vm295, %v805
        %s809 = sand.u32 %s139, 1
        %s810 = scalar_lea.sflag [#allocation4], %s809
        %s811 = sand.u32 %s139, 1
        %s812 = smul.addr %s811, 32
        %s813 = scalar_lea.vmem [#allocation10], %s812
        // Predicated region
        $region53: #{tpu_custom_call.1} parent=35 // pred_check
          %p814 = pneg %p149
        $region54: #{tpu_custom_call.1} parent=35 // pred_check_branch
          %816 = sbr.rel (%p814) target = $region56
        $region55: #{tpu_custom_call.1} parent=35 // pred_region
          %s817 = smul.u32 2, %s28
          %s819 = ssub.s32 512, 512
          %820 = vsyncadd %s810, %s819
          %s821 = smul.addr %s27, 4
          %s822 = sadd.s32 %s817, %s821
          %s823 = smul.addr %s822, 128
          %s824 = scalar_lea.hbm %s4, %s823
          %s825 = sshll.u32 %s813, 4
          %s826 = int_to_ptr.vmem [resolvable:$true] %s825
          %831 = dma.vmem_to_hbm [thread:$0]  %s826, 512, %s824, %s810, 128, 128, 8
        $region56: #{tpu_custom_call.1} parent=35 // pred_fallthru
          _
      $region36: #{tpu_custom_call.1} parent=5 // pred_fallthru
        _
      %p832 = scmp.le.s32.totalorder 2, %s18
      // Predicated region
      $region57: #{tpu_custom_call.1} parent=5 // pred_check
        %p833 = pneg %p832
      $region58: #{tpu_custom_call.1} parent=5 // pred_check_branch
        %835 = sbr.rel (%p833) target = $region60
      $region59: #{tpu_custom_call.1} parent=5 // pred_region
        %s836 = ssub.s32 %s18, 2
        // Predicated region
        $region61: #{tpu_custom_call.1} parent=59 // pred_check
          %p837 = pneg %p155
        $region62: #{tpu_custom_call.1} parent=59 // pred_check_branch
          %839 = sbr.rel (%p837) target = $region64
        $region63: #{tpu_custom_call.1} parent=59 // pred_region
          %s840 = sand.u32 %s140, 1
          %s841 = scalar_lea.sflag [#allocation4], %s840
          %s842 = sand.u32 %s140, 1
          %s843 = smul.addr %s842, 32
          %s844 = scalar_lea.vmem [#allocation10], %s843
          %845 = dma.done %s841, 512
        $region64: #{tpu_custom_call.1} parent=59 // pred_fallthru
          _
      $region60: #{tpu_custom_call.1} parent=5 // pred_fallthru
        _
    $region6: #{tpu_custom_call.1} parent=1 // loop_footer
      %s22 = sadd.s32 1, %s18
    $region7: #{tpu_custom_call.1} parent=1 // loop_footer_branch
      %17 = sbr.rel target = $region3
    $region8: #{tpu_custom_call.1} parent=1 // loop_exit
      _
    %846 = vsyncpa [#allocation3], 1
    %s847 = scalar_lea.sflag [#allocation3], 1
    %848 = vsyncpa %s847, 1
    %849 = vsyncpa [#allocation6], 1
    %850 = vsyncpa [#allocation9], 1
    %s851 = scalar_lea.sflag [#allocation9], 1
    %852 = vsyncpa %s851, 1
    %853 = vsyncpa [#allocation4], 1
    %s854 = scalar_lea.sflag [#allocation4], 1
    %855 = vsyncpa %s854, 1

</llo_original>
